<compile_context>
chip_gen: v7x
topology: tpu7x:2x2x1
jax: 0.10.0
libtpu: 0.0.40
codegen_flags: <defaults>
</compile_context>

<pallas_src>
import functools

import jax
import jax.numpy as jnp
from jax.experimental import pallas as pl
from jax.experimental.pallas import tpu as pltpu


# ---------------------------------------------------------------------------
# Fused kernel: whole Block_dct forward for one batch element.
# ---------------------------------------------------------------------------
def _block_dct_kernel(x_ref, w1_ref, bn1s_ref, bn1b_ref,
                      w2s_ref, s2_ref, b2_ref,
                      caw1t_ref, caw2_ref,
                      o_ref, slab_ref, pad_ref,
                      *, H, W, cin, cout, cr):
    HW = H * W
    PAD = W + 1                      # halo wide enough for every 3x3 tap
    K2 = 9 * cout                    # conv2 im2col rows (skip rows follow)

    x = x_ref[0]                     # (Cin, HW) f32

    # Horizontal edge masks, built in-kernel from a lane iota.  The zero halo
    # absorbs the vertical (dy) edges, so only dx != 0 taps need masking.
    idx = jax.lax.broadcasted_iota(jnp.int32, (1, HW), 1)
    if (W & (W - 1)) == 0:
        col_idx = idx & (W - 1)
    else:
        col_idx = idx % W
    mask_l = jnp.where(col_idx >= 1, 1.0, 0.0)          # dx = -1 taps
    mask_r = jnp.where(col_idx <= W - 2, 1.0, 0.0)      # dx = +1 taps

    # Zero only the halo strips; the interior is fully rewritten per conv.
    zeros_strip = jnp.zeros((cout, PAD), jnp.float32)
    pad_ref[:, 0:PAD] = zeros_strip
    pad_ref[:, PAD + HW:] = zeros_strip

    def fill_taps(v, c):
        # v: (c, HW) f32, already ReLU'd.  Writes the 9 shifted/masked taps
        # as bf16 into slab rows [t*c, (t+1)*c) -- every store is bf16
        # tile-aligned ((16|32) rows at a multiple-of-16 offset, 256 lanes).
        pad_ref[0:c, PAD:PAD + HW] = v
        t = 0
        for dy in (-1, 0, 1):
            for dx in (-1, 0, 1):
                if dy == 0 and dx == 0:
                    tap = v                              # no shift, no mask
                else:
                    off = PAD + dy * W + dx
                    tap = pad_ref[0:c, off:off + HW]
                    if dx == -1:
                        tap = tap * mask_l
                    elif dx == 1:
                        tap = tap * mask_r
                slab_ref[t * c:(t + 1) * c, :] = tap.astype(jnp.bfloat16)
                t += 1

    # ---- rep part 1: ReLU -> SepConv(cin->cout) -> BN  (one MXU dot) -------
    fill_taps(jnp.maximum(x, 0.0), cin)
    y1 = jnp.dot(w1_ref[...], slab_ref[0:9 * cin, :],
                 preferred_element_type=jnp.float32)       # (Cout, HW)
    y1 = y1 * bn1s_ref[...] + bn1b_ref[...]

    # ---- rep part 2 + skip path, fused into ONE MXU dot ---------------------
    fill_taps(jnp.maximum(y1, 0.0), cout)
    slab_ref[K2:K2 + cin, :] = x.astype(jnp.bfloat16)      # raw input -> skip
    ys = jnp.dot(w2s_ref[...], slab_ref[...],
                 preferred_element_type=jnp.float32)       # (2*Cout, HW)
    ys = ys * s2_ref[...] + b2_ref[...]                    # BN2 | BNskip
    y = ys[0:cout, :]
    skip = ys[cout:, :]

    # ---- channel attention: joint avg/max pools + Cout->Cr->Cout MLP --------
    avg_p = jnp.sum(y, axis=1, keepdims=True) * (1.0 / HW)   # (Cout, 1)
    max_p = jnp.max(y, axis=1, keepdims=True)                # (Cout, 1)
    sel = jax.lax.broadcasted_iota(jnp.int32, (1, 2), 1)
    pools = (avg_p * jnp.where(sel == 0, 1.0, 0.0) +
             max_p * jnp.where(sel == 1, 1.0, 0.0))          # (Cout, 2)
    w1t = caw1t_ref[...]                                     # (Cout, Cr)
    w2c = caw2_ref[...]                                      # (Cout, Cr)
    ca = jnp.zeros((cout, 2), jnp.float32)
    for r in range(cr):
        h_r = jnp.maximum(
            jnp.sum(w1t[:, r:r + 1] * pools, axis=0, keepdims=True), 0.0)
        ca = ca + w2c[:, r:r + 1] * h_r                      # (Cout, 2)
    att = jax.nn.sigmoid(ca[:, 0:1] + ca[:, 1:2])            # (Cout, 1)

    # ---- fuse: out = att * y + skip   (lane-dense store: lanes = H*W) -------
    o_ref[0] = y * att + skip


# ---------------------------------------------------------------------------
# Wrapper: NCHW in/out; all layout work is pure reshape (no transpose/pad).
# ---------------------------------------------------------------------------
@jax.jit
def block_dct_forward(inp_nchw, p):
    N, Cin, H, W = inp_nchw.shape
    Cout = p["pw1"].shape[1]
    Cr = p["ca_w1"].shape[0]
    HW = H * W
    PAD = W + 1
    K2 = 9 * Cout

    x = inp_nchw.reshape(N, Cin, HW)             # NCHW -> (N, C, H*W): free

    # Fold depthwise into pointwise, im2col layout:
    #   W[co, t*C + ci] = dw[t, ci] * pw[ci, co]
    def im2col_weights(dw, pw, c):
        w = pw.T[None, :, :] * dw.reshape(9, 1, c)          # (9, Cout, c)
        return jnp.transpose(w, (1, 0, 2)).reshape(Cout, 9 * c)

    w1 = im2col_weights(p["dw1"], p["pw1"], Cin).astype(jnp.bfloat16)

    # conv2 + skip 1x1 folded into one (2*Cout, 9*Cout + Cin) weight matrix.
    w2 = im2col_weights(p["dw2"], p["pw2"], Cout)           # (Cout, 9*Cout)
    w2s = jnp.zeros((2 * Cout, K2 + Cin), jnp.float32)
    w2s = w2s.at[0:Cout, 0:K2].set(w2)
    w2s = w2s.at[Cout:, K2:].set(p["w_skip"].T)
    w2s = w2s.astype(jnp.bfloat16)

    s2 = jnp.concatenate([p["bn2_s"], p["bns_s"]]).reshape(2 * Cout, 1)
    b2 = jnp.concatenate([p["bn2_b"], p["bns_b"]]).reshape(2 * Cout, 1)

    col = lambda v: v.reshape(-1, 1)             # per-channel scale / bias
    rep = lambda shape: pl.BlockSpec(shape, lambda i, s=shape: (0,) * len(s))

    kernel = functools.partial(_block_dct_kernel,
                               H=H, W=W, cin=Cin, cout=Cout, cr=Cr)
    out_flat = pl.pallas_call(
        kernel,
        out_shape=jax.ShapeDtypeStruct((N, Cout, HW), jnp.float32),
        grid=(N,),
        in_specs=[
            pl.BlockSpec((1, Cin, HW), lambda i: (i, 0, 0)),    # input
            rep((Cout, 9 * Cin)),                               # conv1 weights
            rep((Cout, 1)), rep((Cout, 1)),                     # BN1
            rep((2 * Cout, K2 + Cin)),                          # conv2 + skip
            rep((2 * Cout, 1)), rep((2 * Cout, 1)),             # BN2 | BNskip
            rep((Cout, Cr)), rep((Cout, Cr)),                   # CA MLP
        ],
        out_specs=pl.BlockSpec((1, Cout, HW), lambda i: (i, 0, 0)),
        scratch_shapes=[
            pltpu.VMEM((K2 + Cin, HW), jnp.bfloat16),           # im2col slab
            pltpu.VMEM((Cout, HW + 2 * PAD), jnp.float32),      # halo buffer
        ],
        compiler_params=pltpu.CompilerParams(
            dimension_semantics=("parallel",)),
    )(x, w1, col(p["bn1_s"]), col(p["bn1_b"]),
      w2s, s2, b2,
      p["ca_w1"].T, p["ca_w2"])

    return out_flat.reshape(N, Cout, H, W)       # (N, C, H*W) -> NCHW: free


# ---------------------------------------------------------------------------
# Pure-JAX reference (for sanity check)
# ---------------------------------------------------------------------------
def reference_forward(inp_nchw, p):
    x = jnp.transpose(inp_nchw, (0, 2, 3, 1))

    def sep_ref(v, dw, pw, s, b, relu):
        if relu:
            v = jnp.maximum(v, 0.0)
        cin = v.shape[-1]
        v = jax.lax.conv_general_dilated(
            v, dw.reshape(3, 3, 1, cin), (1, 1), "SAME",
            feature_group_count=cin,
            dimension_numbers=("NHWC", "HWIO", "NHWC"))
        v = jnp.einsum("nhwc,cd->nhwd", v, pw)
        return v * s.reshape(1, 1, 1, -1) + b.reshape(1, 1, 1, -1)

    y = sep_ref(x, p["dw1"], p["pw1"], p["bn1_s"], p["bn1_b"], True)
    y = sep_ref(y, p["dw2"], p["pw2"], p["bn2_s"], p["bn2_b"], True)

    avg_p = jnp.mean(y, axis=(1, 2))
    max_p = jnp.max(y, axis=(1, 2))

    def mlp(v):
        return jnp.maximum(v @ p["ca_w1"].T, 0.0) @ p["ca_w2"].T

    att = jax.nn.sigmoid(mlp(avg_p) + mlp(max_p))[:, None, None, :]

    skip = jnp.einsum("nhwc,cd->nhwd", x, p["w_skip"])
    skip = skip * p["bns_s"].reshape(1, 1, 1, -1) + p["bns_b"].reshape(1, 1, 1, -1)

    out = y * att + skip
    return jnp.transpose(out, (0, 3, 1, 2))


# ---------------------------------------------------------------------------
def make_params(key, cin, cout):
    ks = jax.random.split(key, 10)
    eps = 1e-5

    def bn(k, c):
        k1, k2, k3, k4 = jax.random.split(k, 4)
        gamma = 1.0 + 0.1 * jax.random.normal(k1, (c,), jnp.float32)
        beta = 0.1 * jax.random.normal(k2, (c,), jnp.float32)
        mean = 0.1 * jax.random.normal(k3, (c,), jnp.float32)
        var = jax.random.uniform(k4, (c,), jnp.float32, 0.5, 1.5)
        scale = gamma / jnp.sqrt(var + eps)
        bias = beta - mean * scale
        return scale, bias

    cr = cout // 16
    p = {}
    p["dw1"] = 0.2 * jax.random.normal(ks[0], (3, 3, cin), jnp.float32)
    p["pw1"] = 0.2 * jax.random.normal(ks[1], (cin, cout), jnp.float32)
    p["bn1_s"], p["bn1_b"] = bn(ks[2], cout)
    p["dw2"] = 0.2 * jax.random.normal(ks[3], (3, 3, cout), jnp.float32)
    p["pw2"] = 0.2 * jax.random.normal(ks[4], (cout, cout), jnp.float32)
    p["bn2_s"], p["bn2_b"] = bn(ks[5], cout)
    p["w_skip"] = 0.2 * jax.random.normal(ks[6], (cin, cout), jnp.float32)
    p["bns_s"], p["bns_b"] = bn(ks[7], cout)
    p["ca_w1"] = 0.2 * jax.random.normal(ks[8], (cr, cout), jnp.float32)
    p["ca_w2"] = 0.2 * jax.random.normal(ks[9], (cout, cr), jnp.float32)
    return p


if __name__ == "__main__":
    N, Cin, Cout, H, W = 2, 16, 32, 16, 16
    key = jax.random.PRNGKey(0)
    k_in, k_p = jax.random.split(key)
    inp = jax.random.normal(k_in, (N, Cin, H, W), jnp.float32)   # NCHW
    params = make_params(k_p, Cin, Cout)

    out = jax.block_until_ready(block_dct_forward(inp, params))
    ref = jax.block_until_ready(reference_forward(inp, params))

    assert out.shape == (N, Cout, H, W), out.shape
    max_err = float(jnp.max(jnp.abs(out - ref)))
    assert jnp.allclose(out, ref, atol=5e-2, rtol=5e-2), max_err
    print("KERNEL_OK")
</pallas_src>

<mosaic_0001>
module attributes {stable_mosaic.version = 11 : i64} {
  func.func @_block_dct_kernel(%arg0: i32, %arg1: memref<1x16x256xf32, #tpu.memory_space<vmem>>, %arg2: memref<32x144xbf16, #tpu.memory_space<vmem>>, %arg3: memref<32x1xf32, #tpu.memory_space<vmem>>, %arg4: memref<32x1xf32, #tpu.memory_space<vmem>>, %arg5: memref<64x304xbf16, #tpu.memory_space<vmem>>, %arg6: memref<64x1xf32, #tpu.memory_space<vmem>>, %arg7: memref<64x1xf32, #tpu.memory_space<vmem>>, %arg8: memref<32x2xf32, #tpu.memory_space<vmem>>, %arg9: memref<32x2xf32, #tpu.memory_space<vmem>>, %arg10: memref<1x32x256xf32, #tpu.memory_space<vmem>>, %arg11: memref<304x256xbf16, #tpu.memory_space<vmem>>, %arg12: memref<32x290xf32, #tpu.memory_space<vmem>>) attributes {dimension_semantics = [#tpu.dimension_semantics<parallel>], iteration_bounds = array<i64: 2>, scalar_prefetch = 0 : i64, scratch_operands = 2 : i64, tpu.core_type = #tpu.core_type<tc>, window_params = [{transform_indices = @transform_0, window_bounds = array<i64: 1, 16, 256>}, {pipeline_mode = #tpu.pipeline_mode<synchronous>, transform_indices = @transform_1, window_bounds = array<i64: 32, 144>}, {pipeline_mode = #tpu.pipeline_mode<synchronous>, transform_indices = @transform_2, window_bounds = array<i64: 32, 1>}, {pipeline_mode = #tpu.pipeline_mode<synchronous>, transform_indices = @transform_3, window_bounds = array<i64: 32, 1>}, {pipeline_mode = #tpu.pipeline_mode<synchronous>, transform_indices = @transform_4, window_bounds = array<i64: 64, 304>}, {pipeline_mode = #tpu.pipeline_mode<synchronous>, transform_indices = @transform_5, window_bounds = array<i64: 64, 1>}, {pipeline_mode = #tpu.pipeline_mode<synchronous>, transform_indices = @transform_6, window_bounds = array<i64: 64, 1>}, {pipeline_mode = #tpu.pipeline_mode<synchronous>, transform_indices = @transform_7, window_bounds = array<i64: 32, 2>}, {pipeline_mode = #tpu.pipeline_mode<synchronous>, transform_indices = @transform_8, window_bounds = array<i64: 32, 2>}, {transform_indices = @transform_9, window_bounds = array<i64: 1, 32, 256>}]} {
    %c0 = arith.constant 0 : index
    %c0_0 = arith.constant 0 : index
    %c0_1 = arith.constant 0 : index
    %0 = vector.load %arg1[%c0, %c0_0, %c0_1] : memref<1x16x256xf32, #tpu.memory_space<vmem>>, vector<1x16x256xf32>
    %1 = vector.shape_cast %0 : vector<1x16x256xf32> to vector<16x256xf32>
    %2 = tpu.iota {dimensions = array<i32: 1>} : vector<1x256xi32>
    %c15_i32 = arith.constant 15 : i32
    %3 = vector.broadcast %c15_i32 : i32 to vector<1x256xi32>
    %4 = arith.andi %2, %3 : vector<1x256xi32>
    %c1_i32 = arith.constant 1 : i32
    %5 = vector.broadcast %c1_i32 : i32 to vector<1x256xi32>
    %6 = arith.cmpi sge, %4, %5 : vector<1x256xi32>
    %cst = arith.constant 1.000000e+00 : f32
    %cst_2 = arith.constant 0.000000e+00 : f32
    %7 = vector.broadcast %cst : f32 to vector<1x256xf32>
    %8 = vector.broadcast %cst_2 : f32 to vector<1x256xf32>
    %9 = arith.select %6, %7, %8 : vector<1x256xi1>, vector<1x256xf32>
    %c14_i32 = arith.constant 14 : i32
    %10 = vector.broadcast %c14_i32 : i32 to vector<1x256xi32>
    %11 = arith.cmpi sle, %4, %10 : vector<1x256xi32>
    %cst_3 = arith.constant 1.000000e+00 : f32
    %cst_4 = arith.constant 0.000000e+00 : f32
    %12 = vector.broadcast %cst_3 : f32 to vector<1x256xf32>
    %13 = vector.broadcast %cst_4 : f32 to vector<1x256xf32>
    %14 = arith.select %11, %12, %13 : vector<1x256xi1>, vector<1x256xf32>
    %cst_5 = arith.constant 0.000000e+00 : f32
    %15 = vector.broadcast %cst_5 : f32 to vector<32x17xf32>
    %c0_6 = arith.constant 0 : index
    %c0_7 = arith.constant 0 : index
    %16 = vector.load %arg12[%c0_6, %c0_7] : memref<32x290xf32, #tpu.memory_space<vmem>>, vector<32x17xf32>
    tpu.vector_store %arg12[%c0_6, %c0_7], %15 {strides = array<i32>} : memref<32x290xf32, #tpu.memory_space<vmem>>, vector<32x17xf32>,
    %c0_8 = arith.constant 0 : index
    %c273 = arith.constant 273 : index
    %17 = vector.load %arg12[%c0_8, %c273] : memref<32x290xf32, #tpu.memory_space<vmem>>, vector<32x17xf32>
    tpu.vector_store %arg12[%c0_8, %c273], %15 {strides = array<i32>} : memref<32x290xf32, #tpu.memory_space<vmem>>, vector<32x17xf32>,
    %cst_9 = arith.constant 0.000000e+00 : f32
    %18 = vector.broadcast %cst_9 : f32 to vector<16x256xf32>
    %19 = arith.maximumf %1, %18 : vector<16x256xf32>
    %c0_10 = arith.constant 0 : index
    %c17 = arith.constant 17 : index
    %20 = vector.load %arg12[%c0_10, %c17] : memref<32x290xf32, #tpu.memory_space<vmem>>, vector<16x256xf32>
    tpu.vector_store %arg12[%c0_10, %c17], %19 {strides = array<i32>} : memref<32x290xf32, #tpu.memory_space<vmem>>, vector<16x256xf32>,
    %c0_11 = arith.constant 0 : index
    %c0_12 = arith.constant 0 : index
    %21 = vector.load %arg12[%c0_11, %c0_12] : memref<32x290xf32, #tpu.memory_space<vmem>>, vector<16x256xf32>
    %22 = vector.broadcast %9 : vector<1x256xf32> to vector<16x256xf32>
    %23 = arith.mulf %21, %22 : vector<16x256xf32>
    %24 = arith.truncf %23 : vector<16x256xf32> to vector<16x256xbf16>
    %c0_13 = arith.constant 0 : index
    %c0_14 = arith.constant 0 : index
    %25 = vector.load %arg11[%c0_13, %c0_14] : memref<304x256xbf16, #tpu.memory_space<vmem>>, vector<16x256xbf16>
    tpu.vector_store %arg11[%c0_13, %c0_14], %24 {strides = array<i32>} : memref<304x256xbf16, #tpu.memory_space<vmem>>, vector<16x256xbf16>,
    %c0_15 = arith.constant 0 : index
    %c1 = arith.constant 1 : index
    %26 = vector.load %arg12[%c0_15, %c1] : memref<32x290xf32, #tpu.memory_space<vmem>>, vector<16x256xf32>
    %27 = arith.truncf %26 : vector<16x256xf32> to vector<16x256xbf16>
    %c16 = arith.constant 16 : index
    %c0_16 = arith.constant 0 : index
    %28 = vector.load %arg11[%c16, %c0_16] : memref<304x256xbf16, #tpu.memory_space<vmem>>, vector<16x256xbf16>
    tpu.vector_store %arg11[%c16, %c0_16], %27 {strides = array<i32>} : memref<304x256xbf16, #tpu.memory_space<vmem>>, vector<16x256xbf16>,
    %c0_17 = arith.constant 0 : index
    %c2 = arith.constant 2 : index
    %29 = vector.load %arg12[%c0_17, %c2] : memref<32x290xf32, #tpu.memory_space<vmem>>, vector<16x256xf32>
    %30 = vector.broadcast %14 : vector<1x256xf32> to vector<16x256xf32>
    %31 = arith.mulf %29, %30 : vector<16x256xf32>
    %32 = arith.truncf %31 : vector<16x256xf32> to vector<16x256xbf16>
    %c32 = arith.constant 32 : index
    %c0_18 = arith.constant 0 : index
    %33 = vector.load %arg11[%c32, %c0_18] : memref<304x256xbf16, #tpu.memory_space<vmem>>, vector<16x256xbf16>
    tpu.vector_store %arg11[%c32, %c0_18], %32 {strides = array<i32>} : memref<304x256xbf16, #tpu.memory_space<vmem>>, vector<16x256xbf16>,
    %c0_19 = arith.constant 0 : index
    %c16_20 = arith.constant 16 : index
    %34 = vector.load %arg12[%c0_19, %c16_20] : memref<32x290xf32, #tpu.memory_space<vmem>>, vector<16x256xf32>
    %35 = vector.broadcast %9 : vector<1x256xf32> to vector<16x256xf32>
    %36 = arith.mulf %34, %35 : vector<16x256xf32>
    %37 = arith.truncf %36 : vector<16x256xf32> to vector<16x256xbf16>
    %c48 = arith.constant 48 : index
    %c0_21 = arith.constant 0 : index
    %38 = vector.load %arg11[%c48, %c0_21] : memref<304x256xbf16, #tpu.memory_space<vmem>>, vector<16x256xbf16>
    tpu.vector_store %arg11[%c48, %c0_21], %37 {strides = array<i32>} : memref<304x256xbf16, #tpu.memory_space<vmem>>, vector<16x256xbf16>,
    %39 = arith.truncf %19 : vector<16x256xf32> to vector<16x256xbf16>
    %c64 = arith.constant 64 : index
    %c0_22 = arith.constant 0 : index
    %40 = vector.load %arg11[%c64, %c0_22] : memref<304x256xbf16, #tpu.memory_space<vmem>>, vector<16x256xbf16>
    tpu.vector_store %arg11[%c64, %c0_22], %39 {strides = array<i32>} : memref<304x256xbf16, #tpu.memory_space<vmem>>, vector<16x256xbf16>,
    %c0_23 = arith.constant 0 : index
    %c18 = arith.constant 18 : index
    %41 = vector.load %arg12[%c0_23, %c18] : memref<32x290xf32, #tpu.memory_space<vmem>>, vector<16x256xf32>
    %42 = vector.broadcast %14 : vector<1x256xf32> to vector<16x256xf32>
    %43 = arith.mulf %41, %42 : vector<16x256xf32>
    %44 = arith.truncf %43 : vector<16x256xf32> to vector<16x256xbf16>
    %c80 = arith.constant 80 : index
    %c0_24 = arith.constant 0 : index
    %45 = vector.load %arg11[%c80, %c0_24] : memref<304x256xbf16, #tpu.memory_space<vmem>>, vector<16x256xbf16>
    tpu.vector_store %arg11[%c80, %c0_24], %44 {strides = array<i32>} : memref<304x256xbf16, #tpu.memory_space<vmem>>, vector<16x256xbf16>,
    %c0_25 = arith.constant 0 : index
    %c32_26 = arith.constant 32 : index
    %46 = vector.load %arg12[%c0_25, %c32_26] : memref<32x290xf32, #tpu.memory_space<vmem>>, vector<16x256xf32>
    %47 = vector.broadcast %9 : vector<1x256xf32> to vector<16x256xf32>
    %48 = arith.mulf %46, %47 : vector<16x256xf32>
    %49 = arith.truncf %48 : vector<16x256xf32> to vector<16x256xbf16>
    %c96 = arith.constant 96 : index
    %c0_27 = arith.constant 0 : index
    %50 = vector.load %arg11[%c96, %c0_27] : memref<304x256xbf16, #tpu.memory_space<vmem>>, vector<16x256xbf16>
    tpu.vector_store %arg11[%c96, %c0_27], %49 {strides = array<i32>} : memref<304x256xbf16, #tpu.memory_space<vmem>>, vector<16x256xbf16>,
    %c0_28 = arith.constant 0 : index
    %c33 = arith.constant 33 : index
    %51 = vector.load %arg12[%c0_28, %c33] : memref<32x290xf32, #tpu.memory_space<vmem>>, vector<16x256xf32>
    %52 = arith.truncf %51 : vector<16x256xf32> to vector<16x256xbf16>
    %c112 = arith.constant 112 : index
    %c0_29 = arith.constant 0 : index
    %53 = vector.load %arg11[%c112, %c0_29] : memref<304x256xbf16, #tpu.memory_space<vmem>>, vector<16x256xbf16>
    tpu.vector_store %arg11[%c112, %c0_29], %52 {strides = array<i32>} : memref<304x256xbf16, #tpu.memory_space<vmem>>, vector<16x256xbf16>,
    %c0_30 = arith.constant 0 : index
    %c34 = arith.constant 34 : index
    %54 = vector.load %arg12[%c0_30, %c34] : memref<32x290xf32, #tpu.memory_space<vmem>>, vector<16x256xf32>
    %55 = vector.broadcast %14 : vector<1x256xf32> to vector<16x256xf32>
    %56 = arith.mulf %54, %55 : vector<16x256xf32>
    %57 = arith.truncf %56 : vector<16x256xf32> to vector<16x256xbf16>
    %c128 = arith.constant 128 : index
    %c0_31 = arith.constant 0 : index
    %58 = vector.load %arg11[%c128, %c0_31] : memref<304x256xbf16, #tpu.memory_space<vmem>>, vector<16x256xbf16>
    tpu.vector_store %arg11[%c128, %c0_31], %57 {strides = array<i32>} : memref<304x256xbf16, #tpu.memory_space<vmem>>, vector<16x256xbf16>,
    %c0_32 = arith.constant 0 : index
    %c0_33 = arith.constant 0 : index
    %59 = vector.load %arg2[%c0_32, %c0_33] : memref<32x144xbf16, #tpu.memory_space<vmem>>, vector<32x144xbf16>
    %c0_34 = arith.constant 0 : index
    %c0_35 = arith.constant 0 : index
    %60 = vector.load %arg11[%c0_34, %c0_35] : memref<304x256xbf16, #tpu.memory_space<vmem>>, vector<144x256xbf16>
    %cst_36 = arith.constant dense<0.000000e+00> : vector<32x256xf32>
    %61 = tpu.matmul %59, %60, %cst_36 {dimension_numbers = #tpu.dot_dimension_numbers<[1], [0], [0], [1], [0, 0, 1, 1], [], []>} : vector<32x144xbf16>, vector<144x256xbf16>, vector<32x256xf32> -> vector<32x256xf32>
    %c0_37 = arith.constant 0 : index
    %c0_38 = arith.constant 0 : index
    %62 = vector.load %arg3[%c0_37, %c0_38] : memref<32x1xf32, #tpu.memory_space<vmem>>, vector<32x1xf32>
    %63 = vector.broadcast %62 : vector<32x1xf32> to vector<32x256xf32>
    %64 = arith.mulf %61, %63 : vector<32x256xf32>
    %c0_39 = arith.constant 0 : index
    %c0_40 = arith.constant 0 : index
    %65 = vector.load %arg4[%c0_39, %c0_40] : memref<32x1xf32, #tpu.memory_space<vmem>>, vector<32x1xf32>
    %66 = vector.broadcast %65 : vector<32x1xf32> to vector<32x256xf32>
    %67 = arith.addf %64, %66 : vector<32x256xf32>
    %cst_41 = arith.constant 0.000000e+00 : f32
    %68 = vector.broadcast %cst_41 : f32 to vector<32x256xf32>
    %69 = arith.maximumf %67, %68 : vector<32x256xf32>
    %c0_42 = arith.constant 0 : index
    %c17_43 = arith.constant 17 : index
    %70 = vector.load %arg12[%c0_42, %c17_43] : memref<32x290xf32, #tpu.memory_space<vmem>>, vector<32x256xf32>
    tpu.vector_store %arg12[%c0_42, %c17_43], %69 {strides = array<i32>} : memref<32x290xf32, #tpu.memory_space<vmem>>, vector<32x256xf32>,
    %c0_44 = arith.constant 0 : index
    %c0_45 = arith.constant 0 : index
    %71 = vector.load %arg12[%c0_44, %c0_45] : memref<32x290xf32, #tpu.memory_space<vmem>>, vector<32x256xf32>
    %72 = vector.broadcast %9 : vector<1x256xf32> to vector<32x256xf32>
    %73 = arith.mulf %71, %72 : vector<32x256xf32>
    %74 = arith.truncf %73 : vector<32x256xf32> to vector<32x256xbf16>
    %c0_46 = arith.constant 0 : index
    %c0_47 = arith.constant 0 : index
    %75 = vector.load %arg11[%c0_46, %c0_47] : memref<304x256xbf16, #tpu.memory_space<vmem>>, vector<32x256xbf16>
    tpu.vector_store %arg11[%c0_46, %c0_47], %74 {strides = array<i32>} : memref<304x256xbf16, #tpu.memory_space<vmem>>, vector<32x256xbf16>,
    %c0_48 = arith.constant 0 : index
    %c1_49 = arith.constant 1 : index
    %76 = vector.load %arg12[%c0_48, %c1_49] : memref<32x290xf32, #tpu.memory_space<vmem>>, vector<32x256xf32>
    %77 = arith.truncf %76 : vector<32x256xf32> to vector<32x256xbf16>
    %c32_50 = arith.constant 32 : index
    %c0_51 = arith.constant 0 : index
    %78 = vector.load %arg11[%c32_50, %c0_51] : memref<304x256xbf16, #tpu.memory_space<vmem>>, vector<32x256xbf16>
    tpu.vector_store %arg11[%c32_50, %c0_51], %77 {strides = array<i32>} : memref<304x256xbf16, #tpu.memory_space<vmem>>, vector<32x256xbf16>,
    %c0_52 = arith.constant 0 : index
    %c2_53 = arith.constant 2 : index
    %79 = vector.load %arg12[%c0_52, %c2_53] : memref<32x290xf32, #tpu.memory_space<vmem>>, vector<32x256xf32>
    %80 = vector.broadcast %14 : vector<1x256xf32> to vector<32x256xf32>
    %81 = arith.mulf %79, %80 : vector<32x256xf32>
    %82 = arith.truncf %81 : vector<32x256xf32> to vector<32x256xbf16>
    %c64_54 = arith.constant 64 : index
    %c0_55 = arith.constant 0 : index
    %83 = vector.load %arg11[%c64_54, %c0_55] : memref<304x256xbf16, #tpu.memory_space<vmem>>, vector<32x256xbf16>
    tpu.vector_store %arg11[%c64_54, %c0_55], %82 {strides = array<i32>} : memref<304x256xbf16, #tpu.memory_space<vmem>>, vector<32x256xbf16>,
    %c0_56 = arith.constant 0 : index
    %c16_57 = arith.constant 16 : index
    %84 = vector.load %arg12[%c0_56, %c16_57] : memref<32x290xf32, #tpu.memory_space<vmem>>, vector<32x256xf32>
    %85 = vector.broadcast %9 : vector<1x256xf32> to vector<32x256xf32>
    %86 = arith.mulf %84, %85 : vector<32x256xf32>
    %87 = arith.truncf %86 : vector<32x256xf32> to vector<32x256xbf16>
    %c96_58 = arith.constant 96 : index
    %c0_59 = arith.constant 0 : index
    %88 = vector.load %arg11[%c96_58, %c0_59] : memref<304x256xbf16, #tpu.memory_space<vmem>>, vector<32x256xbf16>
    tpu.vector_store %arg11[%c96_58, %c0_59], %87 {strides = array<i32>} : memref<304x256xbf16, #tpu.memory_space<vmem>>, vector<32x256xbf16>,
    %89 = arith.truncf %69 : vector<32x256xf32> to vector<32x256xbf16>
    %c128_60 = arith.constant 128 : index
    %c0_61 = arith.constant 0 : index
    %90 = vector.load %arg11[%c128_60, %c0_61] : memref<304x256xbf16, #tpu.memory_space<vmem>>, vector<32x256xbf16>
    tpu.vector_store %arg11[%c128_60, %c0_61], %89 {strides = array<i32>} : memref<304x256xbf16, #tpu.memory_space<vmem>>, vector<32x256xbf16>,
    %c0_62 = arith.constant 0 : index
    %c18_63 = arith.constant 18 : index
    %91 = vector.load %arg12[%c0_62, %c18_63] : memref<32x290xf32, #tpu.memory_space<vmem>>, vector<32x256xf32>
    %92 = vector.broadcast %14 : vector<1x256xf32> to vector<32x256xf32>
    %93 = arith.mulf %91, %92 : vector<32x256xf32>
    %94 = arith.truncf %93 : vector<32x256xf32> to vector<32x256xbf16>
    %c160 = arith.constant 160 : index
    %c0_64 = arith.constant 0 : index
    %95 = vector.load %arg11[%c160, %c0_64] : memref<304x256xbf16, #tpu.memory_space<vmem>>, vector<32x256xbf16>
    tpu.vector_store %arg11[%c160, %c0_64], %94 {strides = array<i32>} : memref<304x256xbf16, #tpu.memory_space<vmem>>, vector<32x256xbf16>,
    %c0_65 = arith.constant 0 : index
    %c32_66 = arith.constant 32 : index
    %96 = vector.load %arg12[%c0_65, %c32_66] : memref<32x290xf32, #tpu.memory_space<vmem>>, vector<32x256xf32>
    %97 = vector.broadcast %9 : vector<1x256xf32> to vector<32x256xf32>
    %98 = arith.mulf %96, %97 : vector<32x256xf32>
    %99 = arith.truncf %98 : vector<32x256xf32> to vector<32x256xbf16>
    %c192 = arith.constant 192 : index
    %c0_67 = arith.constant 0 : index
    %100 = vector.load %arg11[%c192, %c0_67] : memref<304x256xbf16, #tpu.memory_space<vmem>>, vector<32x256xbf16>
    tpu.vector_store %arg11[%c192, %c0_67], %99 {strides = array<i32>} : memref<304x256xbf16, #tpu.memory_space<vmem>>, vector<32x256xbf16>,
    %c0_68 = arith.constant 0 : index
    %c33_69 = arith.constant 33 : index
    %101 = vector.load %arg12[%c0_68, %c33_69] : memref<32x290xf32, #tpu.memory_space<vmem>>, vector<32x256xf32>
    %102 = arith.truncf %101 : vector<32x256xf32> to vector<32x256xbf16>
    %c224 = arith.constant 224 : index
    %c0_70 = arith.constant 0 : index
    %103 = vector.load %arg11[%c224, %c0_70] : memref<304x256xbf16, #tpu.memory_space<vmem>>, vector<32x256xbf16>
    tpu.vector_store %arg11[%c224, %c0_70], %102 {strides = array<i32>} : memref<304x256xbf16, #tpu.memory_space<vmem>>, vector<32x256xbf16>,
    %c0_71 = arith.constant 0 : index
    %c34_72 = arith.constant 34 : index
    %104 = vector.load %arg12[%c0_71, %c34_72] : memref<32x290xf32, #tpu.memory_space<vmem>>, vector<32x256xf32>
    %105 = vector.broadcast %14 : vector<1x256xf32> to vector<32x256xf32>
    %106 = arith.mulf %104, %105 : vector<32x256xf32>
    %107 = arith.truncf %106 : vector<32x256xf32> to vector<32x256xbf16>
    %c256 = arith.constant 256 : index
    %c0_73 = arith.constant 0 : index
    %108 = vector.load %arg11[%c256, %c0_73] : memref<304x256xbf16, #tpu.memory_space<vmem>>, vector<32x256xbf16>
    tpu.vector_store %arg11[%c256, %c0_73], %107 {strides = array<i32>} : memref<304x256xbf16, #tpu.memory_space<vmem>>, vector<32x256xbf16>,
    %109 = arith.truncf %1 : vector<16x256xf32> to vector<16x256xbf16>
    %c288 = arith.constant 288 : index
    %c0_74 = arith.constant 0 : index
    %110 = vector.load %arg11[%c288, %c0_74] : memref<304x256xbf16, #tpu.memory_space<vmem>>, vector<16x256xbf16>
    tpu.vector_store %arg11[%c288, %c0_74], %109 {strides = array<i32>} : memref<304x256xbf16, #tpu.memory_space<vmem>>, vector<16x256xbf16>,
    %c0_75 = arith.constant 0 : index
    %c0_76 = arith.constant 0 : index
    %111 = vector.load %arg5[%c0_75, %c0_76] : memref<64x304xbf16, #tpu.memory_space<vmem>>, vector<64x304xbf16>
    %c0_77 = arith.constant 0 : index
    %c0_78 = arith.constant 0 : index
    %112 = vector.load %arg11[%c0_77, %c0_78] : memref<304x256xbf16, #tpu.memory_space<vmem>>, vector<304x256xbf16>
    %cst_79 = arith.constant dense<0.000000e+00> : vector<64x256xf32>
    %113 = tpu.matmul %111, %112, %cst_79 {dimension_numbers = #tpu.dot_dimension_numbers<[1], [0], [0], [1], [0, 0, 1, 1], [], []>} : vector<64x304xbf16>, vector<304x256xbf16>, vector<64x256xf32> -> vector<64x256xf32>
    %c0_80 = arith.constant 0 : index
    %c0_81 = arith.constant 0 : index
    %114 = vector.load %arg6[%c0_80, %c0_81] : memref<64x1xf32, #tpu.memory_space<vmem>>, vector<64x1xf32>
    %115 = vector.broadcast %114 : vector<64x1xf32> to vector<64x256xf32>
    %116 = arith.mulf %113, %115 : vector<64x256xf32>
    %c0_82 = arith.constant 0 : index
    %c0_83 = arith.constant 0 : index
    %117 = vector.load %arg7[%c0_82, %c0_83] : memref<64x1xf32, #tpu.memory_space<vmem>>, vector<64x1xf32>
    %118 = vector.broadcast %117 : vector<64x1xf32> to vector<64x256xf32>
    %119 = arith.addf %116, %118 : vector<64x256xf32>
    %120 = vector.extract_strided_slice %119 {offsets = [0, 0], sizes = [32, 256], strides = [1, 1]} : vector<64x256xf32> to vector<32x256xf32>
    %121 = vector.extract_strided_slice %119 {offsets = [32, 0], sizes = [32, 256], strides = [1, 1]} : vector<64x256xf32> to vector<32x256xf32>
    %cst_84 = arith.constant dense<0.000000e+00> : vector<32xf32>
    %122 = vector.multi_reduction <add>, %120, %cst_84 [1] : vector<32x256xf32> to vector<32xf32>
    %123 = vector.shape_cast %122 : vector<32xf32> to vector<32x1xf32>
    %cst_85 = arith.constant 3.906250e-03 : f32
    %124 = vector.broadcast %cst_85 : f32 to vector<32x1xf32>
    %125 = arith.mulf %123, %124 : vector<32x1xf32>
    %cst_86 = arith.constant dense<0xFF800000> : vector<32xf32>
    %126 = vector.multi_reduction <maximumf>, %120, %cst_86 [1] : vector<32x256xf32> to vector<32xf32>
    %127 = vector.shape_cast %126 : vector<32xf32> to vector<32x1xf32>
    %128 = tpu.iota {dimensions = array<i32: 1>} : vector<1x2xi32>
    %c0_i32 = arith.constant 0 : i32
    %129 = vector.broadcast %c0_i32 : i32 to vector<1x2xi32>
    %130 = arith.cmpi eq, %128, %129 : vector<1x2xi32>
    %cst_87 = arith.constant 1.000000e+00 : f32
    %cst_88 = arith.constant 0.000000e+00 : f32
    %131 = vector.broadcast %cst_87 : f32 to vector<1x2xf32>
    %132 = vector.broadcast %cst_88 : f32 to vector<1x2xf32>
    %133 = arith.select %130, %131, %132 : vector<1x2xi1>, vector<1x2xf32>
    %134 = vector.broadcast %125 : vector<32x1xf32> to vector<32x2xf32>
    %135 = vector.broadcast %133 : vector<1x2xf32> to vector<32x2xf32>
    %136 = arith.mulf %134, %135 : vector<32x2xf32>
    %c1_i32_89 = arith.constant 1 : i32
    %137 = vector.broadcast %c1_i32_89 : i32 to vector<1x2xi32>
    %138 = arith.cmpi eq, %128, %137 : vector<1x2xi32>
    %cst_90 = arith.constant 1.000000e+00 : f32
    %cst_91 = arith.constant 0.000000e+00 : f32
    %139 = vector.broadcast %cst_90 : f32 to vector<1x2xf32>
    %140 = vector.broadcast %cst_91 : f32 to vector<1x2xf32>
    %141 = arith.select %138, %139, %140 : vector<1x2xi1>, vector<1x2xf32>
    %142 = vector.broadcast %127 : vector<32x1xf32> to vector<32x2xf32>
    %143 = vector.broadcast %141 : vector<1x2xf32> to vector<32x2xf32>
    %144 = arith.mulf %142, %143 : vector<32x2xf32>
    %145 = arith.addf %136, %144 : vector<32x2xf32>
    %c0_92 = arith.constant 0 : index
    %c0_93 = arith.constant 0 : index
    %146 = vector.load %arg8[%c0_92, %c0_93] : memref<32x2xf32, #tpu.memory_space<vmem>>, vector<32x2xf32>
    %c0_94 = arith.constant 0 : index
    %c0_95 = arith.constant 0 : index
    %147 = vector.load %arg9[%c0_94, %c0_95] : memref<32x2xf32, #tpu.memory_space<vmem>>, vector<32x2xf32>
    %cst_96 = arith.constant 0.000000e+00 : f32
    %148 = vector.broadcast %cst_96 : f32 to vector<32x2xf32>
    %149 = vector.extract_strided_slice %146 {offsets = [0, 0], sizes = [32, 1], strides = [1, 1]} : vector<32x2xf32> to vector<32x1xf32>
    %150 = vector.broadcast %149 : vector<32x1xf32> to vector<32x2xf32>
    %151 = arith.mulf %150, %145 : vector<32x2xf32>
    %cst_97 = arith.constant dense<0.000000e+00> : vector<2xf32>
    %152 = vector.multi_reduction <add>, %151, %cst_97 [0] : vector<32x2xf32> to vector<2xf32>
    %153 = vector.shape_cast %152 : vector<2xf32> to vector<1x2xf32>
    %cst_98 = arith.constant 0.000000e+00 : f32
    %154 = vector.broadcast %cst_98 : f32 to vector<1x2xf32>
    %155 = arith.maximumf %153, %154 : vector<1x2xf32>
    %156 = vector.extract_strided_slice %147 {offsets = [0, 0], sizes = [32, 1], strides = [1, 1]} : vector<32x2xf32> to vector<32x1xf32>
    %157 = vector.broadcast %156 : vector<32x1xf32> to vector<32x2xf32>
    %158 = vector.broadcast %155 : vector<1x2xf32> to vector<32x2xf32>
    %159 = arith.mulf %157, %158 : vector<32x2xf32>
    %160 = arith.addf %148, %159 : vector<32x2xf32>
    %161 = vector.extract_strided_slice %146 {offsets = [0, 1], sizes = [32, 1], strides = [1, 1]} : vector<32x2xf32> to vector<32x1xf32>
    %162 = vector.broadcast %161 : vector<32x1xf32> to vector<32x2xf32>
    %163 = arith.mulf %162, %145 : vector<32x2xf32>
    %cst_99 = arith.constant dense<0.000000e+00> : vector<2xf32>
    %164 = vector.multi_reduction <add>, %163, %cst_99 [0] : vector<32x2xf32> to vector<2xf32>
    %165 = vector.shape_cast %164 : vector<2xf32> to vector<1x2xf32>
    %cst_100 = arith.constant 0.000000e+00 : f32
    %166 = vector.broadcast %cst_100 : f32 to vector<1x2xf32>
    %167 = arith.maximumf %165, %166 : vector<1x2xf32>
    %168 = vector.extract_strided_slice %147 {offsets = [0, 1], sizes = [32, 1], strides = [1, 1]} : vector<32x2xf32> to vector<32x1xf32>
    %169 = vector.broadcast %168 : vector<32x1xf32> to vector<32x2xf32>
    %170 = vector.broadcast %167 : vector<1x2xf32> to vector<32x2xf32>
    %171 = arith.mulf %169, %170 : vector<32x2xf32>
    %172 = arith.addf %160, %171 : vector<32x2xf32>
    %173 = vector.extract_strided_slice %172 {offsets = [0, 0], sizes = [32, 1], strides = [1, 1]} : vector<32x2xf32> to vector<32x1xf32>
    %174 = vector.extract_strided_slice %172 {offsets = [0, 1], sizes = [32, 1], strides = [1, 1]} : vector<32x2xf32> to vector<32x1xf32>
    %175 = arith.addf %173, %174 : vector<32x1xf32>
    %176 = arith.negf %175 : vector<32x1xf32>
    %177 = math.exp %176 : vector<32x1xf32>
    %cst_101 = arith.constant 1.000000e+00 : f32
    %178 = vector.broadcast %cst_101 : f32 to vector<32x1xf32>
    %179 = arith.addf %178, %177 : vector<32x1xf32>
    %180 = arith.divf %178, %179 : vector<32x1xf32>
    %181 = vector.broadcast %180 : vector<32x1xf32> to vector<32x256xf32>
    %182 = arith.mulf %120, %181 : vector<32x256xf32>
    %183 = arith.addf %182, %121 : vector<32x256xf32>
    %c0_102 = arith.constant 0 : index
    %c0_103 = arith.constant 0 : index
    %c0_104 = arith.constant 0 : index
    %184 = vector.load %arg10[%c0_102, %c0_103, %c0_104] : memref<1x32x256xf32, #tpu.memory_space<vmem>>, vector<1x32x256xf32>
    %185 = vector.shape_cast %184 : vector<1x32x256xf32> to vector<32x256xf32>
    %186 = vector.shape_cast %183 : vector<32x256xf32> to vector<1x32x256xf32>
    tpu.vector_store %arg10[%c0_102, %c0_103, %c0_104], %186 {strides = array<i32>} : memref<1x32x256xf32, #tpu.memory_space<vmem>>, vector<1x32x256xf32>,
    return
  }
  func.func @transform_0(%arg0: i32) -> (i32, i32, i32) {
    %c0_i32 = arith.constant 0 : i32
    %c0_i32_0 = arith.constant 0 : i32
    %c0_i32_1 = arith.constant 0 : i32
    return %arg0, %c0_i32, %c0_i32_0 : i32, i32, i32
  }
  func.func @transform_1(%arg0: i32) -> (i32, i32) {
    %c0_i32 = arith.constant 0 : i32
    %c0_i32_0 = arith.constant 0 : i32
    %c0_i32_1 = arith.constant 0 : i32
    return %c0_i32, %c0_i32_0 : i32, i32
  }
  func.func @transform_2(%arg0: i32) -> (i32, i32) {
    %c0_i32 = arith.constant 0 : i32
    %c0_i32_0 = arith.constant 0 : i32
    %c0_i32_1 = arith.constant 0 : i32
    return %c0_i32, %c0_i32_0 : i32, i32
  }
  func.func @transform_3(%arg0: i32) -> (i32, i32) {
    %c0_i32 = arith.constant 0 : i32
    %c0_i32_0 = arith.constant 0 : i32
    %c0_i32_1 = arith.constant 0 : i32
    return %c0_i32, %c0_i32_0 : i32, i32
  }
  func.func @transform_4(%arg0: i32) -> (i32, i32) {
    %c0_i32 = arith.constant 0 : i32
    %c0_i32_0 = arith.constant 0 : i32
    %c0_i32_1 = arith.constant 0 : i32
    return %c0_i32, %c0_i32_0 : i32, i32
  }
  func.func @transform_5(%arg0: i32) -> (i32, i32) {
    %c0_i32 = arith.constant 0 : i32
    %c0_i32_0 = arith.constant 0 : i32
    %c0_i32_1 = arith.constant 0 : i32
    return %c0_i32, %c0_i32_0 : i32, i32
  }
  func.func @transform_6(%arg0: i32) -> (i32, i32) {
    %c0_i32 = arith.constant 0 : i32
    %c0_i32_0 = arith.constant 0 : i32
    %c0_i32_1 = arith.constant 0 : i32
    return %c0_i32, %c0_i32_0 : i32, i32
  }
  func.func @transform_7(%arg0: i32) -> (i32, i32) {
    %c0_i32 = arith.constant 0 : i32
    %c0_i32_0 = arith.constant 0 : i32
    %c0_i32_1 = arith.constant 0 : i32
    return %c0_i32, %c0_i32_0 : i32, i32
  }
  func.func @transform_8(%arg0: i32) -> (i32, i32) {
    %c0_i32 = arith.constant 0 : i32
    %c0_i32_0 = arith.constant 0 : i32
    %c0_i32_1 = arith.constant 0 : i32
    return %c0_i32, %c0_i32_0 : i32, i32
  }
  func.func @transform_9(%arg0: i32) -> (i32, i32, i32) {
    %c0_i32 = arith.constant 0 : i32
    %c0_i32_0 = arith.constant 0 : i32
    %c0_i32_1 = arith.constant 0 : i32
    return %arg0, %c0_i32, %c0_i32_0 : i32, i32, i32
  }
}

</mosaic_0001>

<llo_original>
// kernel: block_dct_forward.1
$region0: #{block_dct_forward.1}
  #allocation0 [shape = 'u32[]', space=smem, size = 0x4, offset = 0x4, fixed_abs, tag = 'smem constant byte address 0x4 - core index']
  #allocation1 [shape = 'u32[144,128]{1,0:T(1,128)}', space=vmem, size = 0x12000, scoped, tag = 'internal scratch']
  #allocation2 [shape = 'bf16[304,256]{1,0:T(16,128)(2,1)}', space=vmem, size = 0x26000, scoped, tag = 'scratch operand']
  #allocation3 [shape = 'f32[32,290]{1,0:T(8,128)}', space=vmem, size = 0xc000, scoped, tag = 'scratch operand']
  %s0 = inlined_call_operand.vmem [shape: f32[2,16,256], index: 0, kind: input, shape index: {}]
  %s1 = inlined_call_operand.vmem [shape: bf16[32,144], index: 1, kind: input, shape index: {}]
  %s2 = inlined_call_operand.vmem [shape: f32[32,1], index: 2, kind: input, shape index: {}]
  %s3 = inlined_call_operand.vmem [shape: f32[32,1], index: 3, kind: input, shape index: {}]
  %s4 = inlined_call_operand.vmem [shape: bf16[64,304], index: 4, kind: input, shape index: {}]
  %s5 = inlined_call_operand.vmem [shape: f32[64,1], index: 5, kind: input, shape index: {}]
  %s6 = inlined_call_operand.vmem [shape: f32[64,1], index: 6, kind: input, shape index: {}]
  %s7 = inlined_call_operand.vmem [shape: f32[32,2], index: 7, kind: input, shape index: {}]
  %s8 = inlined_call_operand.vmem [shape: f32[32,2], index: 8, kind: input, shape index: {}]
  %s9 = inlined_call_operand.vmem [shape: f32[2,32,256], index: 9, kind: output, shape index: {}]
  %s10 = sld [smem:[#allocation0]]
  $region69: #{block_dct_forward.1} parent=0
    _
  %s12 = ssub.s32 1, %s10
  %s13 = scalar_select 0, %s12, %s10
  loop: start=0, step=1, limit=4
  $region2: #{block_dct_forward.1} parent=0 // loop_pre_header
    _
  $region3: #{block_dct_forward.1} parent=0 // loop_header
    %s15 = sphi 0, %s19
    %p16 = scmp.ge.s32.totalorder %s15, 4
    %s25 = sphi 0, %s27
    %s28 = sphi 0, %s25
    %s29 = sphi 0, %s28
    %s45 = sphi 0, %s29
    %s49 = sphi 0, %s49
    %s51 = sphi 0, %s49
    %s52 = sphi 0, %s51
    %s66 = sphi 0, %s52
    %s70 = sphi 0, %s70
    %s72 = sphi 0, %s70
    %s73 = sphi 0, %s72
    %s87 = sphi 0, %s73
    %s91 = sphi 0, %s91
    %s93 = sphi 0, %s91
    %s94 = sphi 0, %s93
    %s108 = sphi 0, %s94
    %s112 = sphi 0, %s112
    %s114 = sphi 0, %s112
    %s115 = sphi 0, %s114
    %s129 = sphi 0, %s115
    %s133 = sphi 0, %s133
    %s135 = sphi 0, %s133
    %s136 = sphi 0, %s135
    %s150 = sphi 0, %s136
    %s154 = sphi 0, %s154
    %s156 = sphi 0, %s154
    %s157 = sphi 0, %s156
    %s171 = sphi 0, %s157
    %s175 = sphi 0, %s175
    %s177 = sphi 0, %s175
    %s178 = sphi 0, %s177
    %s192 = sphi 0, %s178
    %s196 = sphi 0, %s196
    %s198 = sphi 0, %s196
    %s199 = sphi 0, %s198
    %s213 = sphi 0, %s199
    %s219 = sphi 0, %s221
    %s222 = sphi 0, %s219
    %s223 = sphi 0, %s222
    %s239 = sphi 0, %s223
  $region4: #{block_dct_forward.1} parent=0 // loop_header_branch
    %18 = sbr.rel (%p16) target = $region8
  $region5: #{block_dct_forward.1} parent=0 // loop_body
    %s20 = ssub.s32 %s15, 1
    %s21 = ssub.s32 %s15, 2
    %s22 = sadd.s32 %s15, 1
    %s23 = ssub.s32 %s15, %s22
    %p24 = scmp.eq.s32.totalorder %s23, 0
    %s26 = sadd.s32 %s25, 1
    %s27 = scalar_select %p24, %s25, %s26
    %p30 = pneg %p24
    %p31 = scmp.eq.s32.totalorder %s15, 1
    %p32 = por %p30, %p31
    %p33 = scmp.ne.s32.totalorder %s25, %s28
    %p34 = scmp.eq.s32.totalorder %s15, 0
    %p35 = por %p33, %p34
    %p36 = scmp.ne.s32.totalorder %s25, %s28
    %p37 = scmp.eq.s32.totalorder %s20, 1
    %p38 = por %p36, %p37
    %p39 = scmp.ne.s32.totalorder %s28, %s29
    %p40 = scmp.eq.s32.totalorder %s20, 0
    %p41 = por %p39, %p40
    %p42 = scmp.ne.s32.totalorder %s28, %s29
    %p43 = scmp.eq.s32.totalorder %s21, 1
    %p44 = por %p42, %p43
    %p46 = scmp.ne.s32.totalorder %s29, %s45
    %p47 = scmp.eq.s32.totalorder %s21, 0
    %p48 = por %p46, %p47
    %s50 = sadd.s32 %s49, 1
    %p53 = scmp.eq.s32.totalorder %s15, 1
    %p54 = scmp.ne.s32.totalorder %s49, %s51
    %p55 = scmp.eq.s32.totalorder %s15, 0
    %p56 = por %p54, %p55
    %p57 = scmp.ne.s32.totalorder %s49, %s51
    %p58 = scmp.eq.s32.totalorder %s20, 1
    %p59 = por %p57, %p58
    %p60 = scmp.ne.s32.totalorder %s51, %s52
    %p61 = scmp.eq.s32.totalorder %s20, 0
    %p62 = por %p60, %p61
    %p63 = scmp.ne.s32.totalorder %s51, %s52
    %p64 = scmp.eq.s32.totalorder %s21, 1
    %p65 = por %p63, %p64
    %p67 = scmp.ne.s32.totalorder %s52, %s66
    %p68 = scmp.eq.s32.totalorder %s21, 0
    %p69 = por %p67, %p68
    %s71 = sadd.s32 %s70, 1
    %p74 = scmp.eq.s32.totalorder %s15, 1
    %p75 = scmp.ne.s32.totalorder %s70, %s72
    %p76 = scmp.eq.s32.totalorder %s15, 0
    %p77 = por %p75, %p76
    %p78 = scmp.ne.s32.totalorder %s70, %s72
    %p79 = scmp.eq.s32.totalorder %s20, 1
    %p80 = por %p78, %p79
    %p81 = scmp.ne.s32.totalorder %s72, %s73
    %p82 = scmp.eq.s32.totalorder %s20, 0
    %p83 = por %p81, %p82
    %p84 = scmp.ne.s32.totalorder %s72, %s73
    %p85 = scmp.eq.s32.totalorder %s21, 1
    %p86 = por %p84, %p85
    %p88 = scmp.ne.s32.totalorder %s73, %s87
    %p89 = scmp.eq.s32.totalorder %s21, 0
    %p90 = por %p88, %p89
    %s92 = sadd.s32 %s91, 1
    %p95 = scmp.eq.s32.totalorder %s15, 1
    %p96 = scmp.ne.s32.totalorder %s91, %s93
    %p97 = scmp.eq.s32.totalorder %s15, 0
    %p98 = por %p96, %p97
    %p99 = scmp.ne.s32.totalorder %s91, %s93
    %p100 = scmp.eq.s32.totalorder %s20, 1
    %p101 = por %p99, %p100
    %p102 = scmp.ne.s32.totalorder %s93, %s94
    %p103 = scmp.eq.s32.totalorder %s20, 0
    %p104 = por %p102, %p103
    %p105 = scmp.ne.s32.totalorder %s93, %s94
    %p106 = scmp.eq.s32.totalorder %s21, 1
    %p107 = por %p105, %p106
    %p109 = scmp.ne.s32.totalorder %s94, %s108
    %p110 = scmp.eq.s32.totalorder %s21, 0
    %p111 = por %p109, %p110
    %s113 = sadd.s32 %s112, 1
    %p116 = scmp.eq.s32.totalorder %s15, 1
    %p117 = scmp.ne.s32.totalorder %s112, %s114
    %p118 = scmp.eq.s32.totalorder %s15, 0
    %p119 = por %p117, %p118
    %p120 = scmp.ne.s32.totalorder %s112, %s114
    %p121 = scmp.eq.s32.totalorder %s20, 1
    %p122 = por %p120, %p121
    %p123 = scmp.ne.s32.totalorder %s114, %s115
    %p124 = scmp.eq.s32.totalorder %s20, 0
    %p125 = por %p123, %p124
    %p126 = scmp.ne.s32.totalorder %s114, %s115
    %p127 = scmp.eq.s32.totalorder %s21, 1
    %p128 = por %p126, %p127
    %p130 = scmp.ne.s32.totalorder %s115, %s129
    %p131 = scmp.eq.s32.totalorder %s21, 0
    %p132 = por %p130, %p131
    %s134 = sadd.s32 %s133, 1
    %p137 = scmp.eq.s32.totalorder %s15, 1
    %p138 = scmp.ne.s32.totalorder %s133, %s135
    %p139 = scmp.eq.s32.totalorder %s15, 0
    %p140 = por %p138, %p139
    %p141 = scmp.ne.s32.totalorder %s133, %s135
    %p142 = scmp.eq.s32.totalorder %s20, 1
    %p143 = por %p141, %p142
    %p144 = scmp.ne.s32.totalorder %s135, %s136
    %p145 = scmp.eq.s32.totalorder %s20, 0
    %p146 = por %p144, %p145
    %p147 = scmp.ne.s32.totalorder %s135, %s136
    %p148 = scmp.eq.s32.totalorder %s21, 1
    %p149 = por %p147, %p148
    %p151 = scmp.ne.s32.totalorder %s136, %s150
    %p152 = scmp.eq.s32.totalorder %s21, 0
    %p153 = por %p151, %p152
    %s155 = sadd.s32 %s154, 1
    %p158 = scmp.eq.s32.totalorder %s15, 1
    %p159 = scmp.ne.s32.totalorder %s154, %s156
    %p160 = scmp.eq.s32.totalorder %s15, 0
    %p161 = por %p159, %p160
    %p162 = scmp.ne.s32.totalorder %s154, %s156
    %p163 = scmp.eq.s32.totalorder %s20, 1
    %p164 = por %p162, %p163
    %p165 = scmp.ne.s32.totalorder %s156, %s157
    %p166 = scmp.eq.s32.totalorder %s20, 0
    %p167 = por %p165, %p166
    %p168 = scmp.ne.s32.totalorder %s156, %s157
    %p169 = scmp.eq.s32.totalorder %s21, 1
    %p170 = por %p168, %p169
    %p172 = scmp.ne.s32.totalorder %s157, %s171
    %p173 = scmp.eq.s32.totalorder %s21, 0
    %p174 = por %p172, %p173
    %s176 = sadd.s32 %s175, 1
    %p179 = scmp.eq.s32.totalorder %s15, 1
    %p180 = scmp.ne.s32.totalorder %s175, %s177
    %p181 = scmp.eq.s32.totalorder %s15, 0
    %p182 = por %p180, %p181
    %p183 = scmp.ne.s32.totalorder %s175, %s177
    %p184 = scmp.eq.s32.totalorder %s20, 1
    %p185 = por %p183, %p184
    %p186 = scmp.ne.s32.totalorder %s177, %s178
    %p187 = scmp.eq.s32.totalorder %s20, 0
    %p188 = por %p186, %p187
    %p189 = scmp.ne.s32.totalorder %s177, %s178
    %p190 = scmp.eq.s32.totalorder %s21, 1
    %p191 = por %p189, %p190
    %p193 = scmp.ne.s32.totalorder %s178, %s192
    %p194 = scmp.eq.s32.totalorder %s21, 0
    %p195 = por %p193, %p194
    %s197 = sadd.s32 %s196, 1
    %p200 = scmp.eq.s32.totalorder %s15, 1
    %p201 = scmp.ne.s32.totalorder %s196, %s198
    %p202 = scmp.eq.s32.totalorder %s15, 0
    %p203 = por %p201, %p202
    %p204 = scmp.ne.s32.totalorder %s196, %s198
    %p205 = scmp.eq.s32.totalorder %s20, 1
    %p206 = por %p204, %p205
    %p207 = scmp.ne.s32.totalorder %s198, %s199
    %p208 = scmp.eq.s32.totalorder %s20, 0
    %p209 = por %p207, %p208
    %p210 = scmp.ne.s32.totalorder %s198, %s199
    %p211 = scmp.eq.s32.totalorder %s21, 1
    %p212 = por %p210, %p211
    %p214 = scmp.ne.s32.totalorder %s199, %s213
    %p215 = scmp.eq.s32.totalorder %s21, 0
    %p216 = por %p214, %p215
    %s217 = ssub.s32 %s15, %s22
    %p218 = scmp.eq.s32.totalorder %s217, 0
    %s220 = sadd.s32 %s219, 1
    %s221 = scalar_select %p218, %s219, %s220
    %p224 = pneg %p218
    %p225 = scmp.eq.s32.totalorder %s15, 1
    %p226 = por %p224, %p225
    %p227 = scmp.ne.s32.totalorder %s219, %s222
    %p228 = scmp.eq.s32.totalorder %s15, 0
    %p229 = por %p227, %p228
    %p230 = scmp.ne.s32.totalorder %s219, %s222
    %p231 = scmp.eq.s32.totalorder %s20, 1
    %p232 = por %p230, %p231
    %p233 = scmp.ne.s32.totalorder %s222, %s223
    %p234 = scmp.eq.s32.totalorder %s20, 0
    %p235 = por %p233, %p234
    %p236 = scmp.ne.s32.totalorder %s222, %s223
    %p237 = scmp.eq.s32.totalorder %s21, 1
    %p238 = por %p236, %p237
    %p240 = scmp.ne.s32.totalorder %s223, %s239
    %p241 = scmp.eq.s32.totalorder %s21, 0
    %p242 = por %p240, %p241
    %p243 = scmp.le.s32.totalorder 1, %s15
    %p244 = scmp.lt.s32.totalorder %s15, 3
    %p245 = pnand %p243, %p244
    %p246 = pneg %p245
    // Predicated region
    $region9: #{block_dct_forward.1} parent=5 // pred_check
      _
    $region10: #{block_dct_forward.1} parent=5 // pred_check_branch
      %248 = sbr.rel (%p245) target = $region12
    $region11: #{block_dct_forward.1} parent=5 // pred_region
      %s249 = ssub.s32 %s15, 1
      // Predicated region
      $region13: #{block_dct_forward.1} parent=11 // pred_check
        %p250 = pneg %p62
      $region14: #{block_dct_forward.1} parent=11 // pred_check_branch
        %252 = sbr.rel (%p250) target = $region16
      $region15: #{block_dct_forward.1} parent=11 // pred_region
        _
      $region16: #{block_dct_forward.1} parent=11 // pred_fallthru
        _
      // Predicated region
      $region17: #{block_dct_forward.1} parent=11 // pred_check
        %p253 = pneg %p83
      $region18: #{block_dct_forward.1} parent=11 // pred_check_branch
        %255 = sbr.rel (%p253) target = $region20
      $region19: #{block_dct_forward.1} parent=11 // pred_region
        _
      $region20: #{block_dct_forward.1} parent=11 // pred_fallthru
        _
      // Predicated region
      $region21: #{block_dct_forward.1} parent=11 // pred_check
        %p256 = pneg %p104
      $region22: #{block_dct_forward.1} parent=11 // pred_check_branch
        %258 = sbr.rel (%p256) target = $region24
      $region23: #{block_dct_forward.1} parent=11 // pred_region
        _
      $region24: #{block_dct_forward.1} parent=11 // pred_fallthru
        _
      // Predicated region
      $region25: #{block_dct_forward.1} parent=11 // pred_check
        %p259 = pneg %p125
      $region26: #{block_dct_forward.1} parent=11 // pred_check_branch
        %261 = sbr.rel (%p259) target = $region28
      $region27: #{block_dct_forward.1} parent=11 // pred_region
        _
      $region28: #{block_dct_forward.1} parent=11 // pred_fallthru
        _
      // Predicated region
      $region29: #{block_dct_forward.1} parent=11 // pred_check
        %p262 = pneg %p146
      $region30: #{block_dct_forward.1} parent=11 // pred_check_branch
        %264 = sbr.rel (%p262) target = $region32
      $region31: #{block_dct_forward.1} parent=11 // pred_region
        _
      $region32: #{block_dct_forward.1} parent=11 // pred_fallthru
        _
      // Predicated region
      $region33: #{block_dct_forward.1} parent=11 // pred_check
        %p265 = pneg %p167
      $region34: #{block_dct_forward.1} parent=11 // pred_check_branch
        %267 = sbr.rel (%p265) target = $region36
      $region35: #{block_dct_forward.1} parent=11 // pred_region
        _
      $region36: #{block_dct_forward.1} parent=11 // pred_fallthru
        _
      // Predicated region
      $region37: #{block_dct_forward.1} parent=11 // pred_check
        %p268 = pneg %p188
      $region38: #{block_dct_forward.1} parent=11 // pred_check_branch
        %270 = sbr.rel (%p268) target = $region40
      $region39: #{block_dct_forward.1} parent=11 // pred_region
        _
      $region40: #{block_dct_forward.1} parent=11 // pred_fallthru
        _
      // Predicated region
      $region41: #{block_dct_forward.1} parent=11 // pred_check
        %p271 = pneg %p209
      $region42: #{block_dct_forward.1} parent=11 // pred_check_branch
        %273 = sbr.rel (%p271) target = $region44
      $region43: #{block_dct_forward.1} parent=11 // pred_region
        _
      $region44: #{block_dct_forward.1} parent=11 // pred_fallthru
        _
    $region12: #{block_dct_forward.1} parent=5 // pred_fallthru
      _
    %p274 = scmp.lt.s32.totalorder %s15, 2
    // Predicated region
    $region45: #{block_dct_forward.1} parent=5 // pred_check
      %p275 = pneg %p274
    $region46: #{block_dct_forward.1} parent=5 // pred_check_branch
      %277 = sbr.rel (%p275) target = $region48
    $region47: #{block_dct_forward.1} parent=5 // pred_region
      // Predicated region
      $region49: #{block_dct_forward.1} parent=47 // pred_check
        %p278 = pneg %p35
      $region50: #{block_dct_forward.1} parent=47 // pred_check_branch
        %280 = sbr.rel (%p278) target = $region52
      $region51: #{block_dct_forward.1} parent=47 // pred_region
        %p281 = scmp.lt.s32.totalorder %s15, 1
        %s282 = scalar_select %p281, %s15, 1
        %s283 = smul.addr %s282, 4
        %s284 = smul.addr %s283, 8
        %s285 = scalar_lea.vmem %s0, %s284
      $region52: #{block_dct_forward.1} parent=47 // pred_fallthru
        _
    $region48: #{block_dct_forward.1} parent=5 // pred_fallthru
      _
    %p286 = scmp.le.s32.totalorder 1, %s15
    %p287 = scmp.lt.s32.totalorder %s15, 3
    %p288 = pnand %p286, %p287
    %p289 = pneg %p288
    // Predicated region
    $region53: #{block_dct_forward.1} parent=5 // pred_check
      _
    $region54: #{block_dct_forward.1} parent=5 // pred_check_branch
      %291 = sbr.rel (%p288) target = $region56
    $region55: #{block_dct_forward.1} parent=5 // pred_region
      %s292 = ssub.s32 %s15, 1
      %p293 = scmp.lt.s32.totalorder %s20, 1
      %s294 = scalar_select %p293, %s20, 1
      %s295 = smul.addr %s294, 4
      %s296 = smul.addr %s295, 8
      %s297 = scalar_lea.vmem %s0, %s296
      %p298 = pneg %p41
      %p299 = pneg %p38
      %p300 = pneg %p62
      %p301 = pneg %p59
      %p302 = pneg %p83
      %p303 = pneg %p80
      %p304 = pneg %p104
      %p305 = pneg %p101
      %p306 = pneg %p125
      %p307 = pneg %p122
      %p308 = pneg %p146
      %p309 = pneg %p143
      %p310 = pneg %p167
      %p311 = pneg %p164
      %p312 = pneg %p188
      %p313 = pneg %p185
      %p314 = pneg %p209
      %p315 = pneg %p206
      %p316 = pneg %p235
      %p317 = pneg %p232
      %p318 = scmp.lt.s32.totalorder %s20, 1
      %s319 = scalar_select %p318, %s20, 1
      %s320 = smul.addr %s319, 8
      %s321 = smul.addr %s320, 8
      %s322 = scalar_lea.vmem %s9, %s321
      %p323 = scmp.lt.s32.totalorder %s20, 1
      %s324 = scalar_select %p323, %s20, 1
      %s325 = smul.addr %s324, 4
      %s326 = smul.addr %s325, 8
      %s327 = scalar_lea.vmem %s0, %s326
      %p328 = scmp.lt.s32.totalorder %s20, 1
      %s329 = scalar_select %p328, %s20, 1
      %s330 = smul.addr %s329, 8
      %s331 = smul.addr %s330, 8
      %s332 = scalar_lea.vmem %s9, %s331
      %v334 = vld [vmem:[%s327] sm:$0xff]
      %v335 = vld [vmem:[%s327 + $0x8] sm:$0xff]
      %v336 = vld [vmem:[%s327 + $0x10] sm:$0xff]
      %v337 = vld [vmem:[%s327 + $0x18] sm:$0xff]
      %v338 = vlaneseq
      %v339 = vand.u32 %v338, 127
      %v340 = vadd.s32 %v339, 128
      %v341 = vand.u32 %v339, 15
      %v342 = vand.u32 %v340, 15
      %vm343 = vcmp.ge.s32.totalorder %v341, 1
      %vm344 = vcmp.ge.s32.totalorder %v342, 1
      %v345 = vsel %vm343, 1.0, 0.0
      %v346 = vsel %vm344, 1.0, 0.0
      %vm347 = vcmp.le.s32.totalorder %v341, 14
      %vm348 = vcmp.le.s32.totalorder %v342, 14
      %v349 = vsel %vm347, 1.0, 0.0
      %v350 = vsel %vm348, 1.0, 0.0
      %vm351 = vcmask 138240
      %352 = vst.msk [vmem:[#allocation3] sm:$0xff] %vm351, 0.0
      %353 = vst.msk [vmem:[#allocation3 + $0x18] sm:$0xff] %vm351, 0.0
      %354 = vst.msk [vmem:[#allocation3 + $0x30] sm:$0xff] %vm351, 0.0
      %355 = vst.msk [vmem:[#allocation3 + $0x48] sm:$0xff] %vm351, 0.0
      %vm356 = vcmask 277640
      %357 = vst.msk [vmem:[#allocation3 + $0x10] sm:$0xff] %vm356, 0.0
      %358 = vst.msk [vmem:[#allocation3 + $0x28] sm:$0xff] %vm356, 0.0
      %359 = vst.msk [vmem:[#allocation3 + $0x40] sm:$0xff] %vm356, 0.0
      %360 = vst.msk [vmem:[#allocation3 + $0x58] sm:$0xff] %vm356, 0.0
      %v361 = vmax.f32 %v334, 0.0
      %v362 = vmax.f32 %v335, 0.0
      %v363 = vmax.f32 %v336, 0.0
      %v364 = vmax.f32 %v337, 0.0
      %369 = vrot.lane.b32.xlu0 %v361, 17
      %v370 = vpop.permute.xlu0 %369
      %371 = vrot.lane.b32.xlu0 %v362, 17
      %v372 = vpop.permute.xlu0 %371
      %373 = vrot.lane.b32.xlu0 %v363, 17
      %v374 = vpop.permute.xlu0 %373
      %375 = vrot.lane.b32.xlu0 %v364, 17
      %v376 = vpop.permute.xlu0 %375
      %v377 = vsel %vm351, %v370, %v372
      %v378 = vsel %vm351, %v374, %v376
      %vm385 = vcmask 1047688
      %386 = vst.msk [vmem:[#allocation3] sm:$0xff] %vm385, %v370
      %387 = vst [vmem:[#allocation3 + $0x8] sm:$0xff] %v377
      %388 = vst.msk [vmem:[#allocation3 + $0x10] sm:$0xff] %vm351, %v372
      %389 = vst.msk [vmem:[#allocation3 + $0x18] sm:$0xff] %vm385, %v374
      %390 = vst [vmem:[#allocation3 + $0x20] sm:$0xff] %v378
      %391 = vst.msk [vmem:[#allocation3 + $0x28] sm:$0xff] %vm351, %v376
      %v392 = vld [vmem:[#allocation3] sm:$0xff]
      %v393 = vld [vmem:[#allocation3 + $0x8] sm:$0xff]
      %v394 = vld [vmem:[#allocation3 + $0x18] sm:$0xff]
      %v395 = vld [vmem:[#allocation3 + $0x20] sm:$0xff]
      %v396 = vmul.f32 %v392, %v345
      %v397 = vmul.f32 %v393, %v346
      %v398 = vmul.f32 %v394, %v345
      %v399 = vmul.f32 %v395, %v346
      %v400 = vpack.c.bf16 %v398, %v396
      %v401 = vpack.c.bf16 %v399, %v397
      %402 = vst [vmem:[#allocation2] sm:$0xff] %v400
      %403 = vst [vmem:[#allocation2 + $0x8] sm:$0xff] %v401
      %v404 = vld [vmem:[#allocation3] sm:$0xff]
      %v405 = vld [vmem:[#allocation3 + $0x8] sm:$0xff]
      %v406 = vld [vmem:[#allocation3 + $0x10] sm:$0xff]
      %v407 = vld [vmem:[#allocation3 + $0x18] sm:$0xff]
      %v408 = vld [vmem:[#allocation3 + $0x20] sm:$0xff]
      %v409 = vld [vmem:[#allocation3 + $0x28] sm:$0xff]
      %v410 = vpack.c.bf16 %v407, %v404
      %v411 = vpack.c.bf16 %v408, %v405
      %v412 = vpack.c.bf16 %v409, %v406
      %416 = vrot.lane.b32.xlu0 %v410, 127
      %v417 = vpop.permute.xlu0 %416
      %418 = vrot.lane.b32.xlu0 %v411, 127
      %v419 = vpop.permute.xlu0 %418
      %420 = vrot.lane.b32.xlu0 %v412, 127
      %v421 = vpop.permute.xlu0 %420
      %vm422 = vcmask 1039360
      %v423 = vsel %vm422, %v417, %v419
      %v424 = vsel %vm422, %v419, %v421
      %427 = vst [vmem:[#allocation2 + $0x10] sm:$0xff] %v423
      %428 = vst [vmem:[#allocation2 + $0x18] sm:$0xff] %v424
      %v429 = vld [vmem:[#allocation3] sm:$0xff]
      %v430 = vld [vmem:[#allocation3 + $0x8] sm:$0xff]
      %v431 = vld [vmem:[#allocation3 + $0x10] sm:$0xff]
      %v432 = vld [vmem:[#allocation3 + $0x18] sm:$0xff]
      %v433 = vld [vmem:[#allocation3 + $0x20] sm:$0xff]
      %v434 = vld [vmem:[#allocation3 + $0x28] sm:$0xff]
      %437 = vrot.lane.b32.xlu0 %v349, 2
      %v438 = vpop.permute.xlu0 %437
      %439 = vrot.lane.b32.xlu0 %v350, 2
      %v440 = vpop.permute.xlu0 %439
      %vm441 = vcmask 15360
      %v442 = vsel %vm441, %v438, %v440
      %v446 = vmul.f32 %v429, %v438
      %v447 = vmul.f32 %v430, %v442
      %v448 = vmul.f32 %v431, %v440
      %v449 = vmul.f32 %v432, %v438
      %v450 = vmul.f32 %v433, %v442
      %v451 = vmul.f32 %v434, %v440
      %v452 = vpack.c.bf16 %v449, %v446
      %v453 = vpack.c.bf16 %v450, %v447
      %v454 = vpack.c.bf16 %v451, %v448
      %458 = vrot.lane.b32.xlu0 %v452, 126
      %v459 = vpop.permute.xlu0 %458
      %460 = vrot.lane.b32.xlu0 %v453, 126
      %v461 = vpop.permute.xlu0 %460
      %462 = vrot.lane.b32.xlu0 %v454, 126
      %v463 = vpop.permute.xlu0 %462
      %vm464 = vcmask 1031168
      %v465 = vsel %vm464, %v459, %v461
      %v466 = vsel %vm464, %v461, %v463
      %469 = vst [vmem:[#allocation2 + $0x20] sm:$0xff] %v465
      %470 = vst [vmem:[#allocation2 + $0x28] sm:$0xff] %v466
      %v471 = vld [vmem:[#allocation3] sm:$0xff]
      %v472 = vld [vmem:[#allocation3 + $0x8] sm:$0xff]
      %v473 = vld [vmem:[#allocation3 + $0x10] sm:$0xff]
      %v474 = vld [vmem:[#allocation3 + $0x18] sm:$0xff]
      %v475 = vld [vmem:[#allocation3 + $0x20] sm:$0xff]
      %v476 = vld [vmem:[#allocation3 + $0x28] sm:$0xff]
      %479 = vrot.lane.b32.xlu0 %v345, 16
      %v480 = vpop.permute.xlu0 %479
      %481 = vrot.lane.b32.xlu0 %v346, 16
      %v482 = vpop.permute.xlu0 %481
      %vm483 = vcmask 130048
      %v484 = vsel %vm483, %v480, %v482
      %v488 = vmul.f32 %v471, %v480
      %v489 = vmul.f32 %v472, %v484
      %v490 = vmul.f32 %v473, %v482
      %v491 = vmul.f32 %v474, %v480
      %v492 = vmul.f32 %v475, %v484
      %v493 = vmul.f32 %v476, %v482
      %v494 = vpack.c.bf16 %v491, %v488
      %v495 = vpack.c.bf16 %v492, %v489
      %v496 = vpack.c.bf16 %v493, %v490
      %500 = vrot.lane.b32.xlu0 %v494, 112
      %v501 = vpop.permute.xlu0 %500
      %502 = vrot.lane.b32.xlu0 %v495, 112
      %v503 = vpop.permute.xlu0 %502
      %504 = vrot.lane.b32.xlu0 %v496, 112
      %v505 = vpop.permute.xlu0 %504
      %vm506 = vcmask 916480
      %v507 = vsel %vm506, %v501, %v503
      %v508 = vsel %vm506, %v503, %v505
      %511 = vst [vmem:[#allocation2 + $0x30] sm:$0xff] %v507
      %512 = vst [vmem:[#allocation2 + $0x38] sm:$0xff] %v508
      %v513 = vpack.c.bf16 %v363, %v361
      %v514 = vpack.c.bf16 %v364, %v362
      %515 = vst [vmem:[#allocation2 + $0x40] sm:$0xff] %v513
      %516 = vst [vmem:[#allocation2 + $0x48] sm:$0xff] %v514
      %v517 = vld [vmem:[#allocation3] sm:$0xff]
      %v518 = vld [vmem:[#allocation3 + $0x8] sm:$0xff]
      %v519 = vld [vmem:[#allocation3 + $0x10] sm:$0xff]
      %v520 = vld [vmem:[#allocation3 + $0x18] sm:$0xff]
      %v521 = vld [vmem:[#allocation3 + $0x20] sm:$0xff]
      %v522 = vld [vmem:[#allocation3 + $0x28] sm:$0xff]
      %523 = vrot.lane.b32.xlu0 %v349, 18
      %v524 = vpop.permute.xlu0 %523
      %525 = vrot.lane.b32.xlu0 %v350, 18
      %v526 = vpop.permute.xlu0 %525
      %vm527 = vcmask 146432
      %v528 = vsel %vm527, %v524, %v526
      %v532 = vmul.f32 %v517, %v524
      %v533 = vmul.f32 %v518, %v528
      %v534 = vmul.f32 %v519, %v526
      %v535 = vmul.f32 %v520, %v524
      %v536 = vmul.f32 %v521, %v528
      %v537 = vmul.f32 %v522, %v526
      %v538 = vpack.c.bf16 %v535, %v532
      %v539 = vpack.c.bf16 %v536, %v533
      %v540 = vpack.c.bf16 %v537, %v534
      %544 = vrot.lane.b32.xlu0 %v538, 110
      %v545 = vpop.permute.xlu0 %544
      %546 = vrot.lane.b32.xlu0 %v539, 110
      %v547 = vpop.permute.xlu0 %546
      %548 = vrot.lane.b32.xlu0 %v540, 110
      %v549 = vpop.permute.xlu0 %548
      %vm550 = vcmask 900096
      %v551 = vsel %vm550, %v545, %v547
      %v552 = vsel %vm550, %v547, %v549
      %555 = vst [vmem:[#allocation2 + $0x50] sm:$0xff] %v551
      %556 = vst [vmem:[#allocation2 + $0x58] sm:$0xff] %v552
      %v557 = vld [vmem:[#allocation3] sm:$0xff]
      %v558 = vld [vmem:[#allocation3 + $0x8] sm:$0xff]
      %v559 = vld [vmem:[#allocation3 + $0x10] sm:$0xff]
      %v560 = vld [vmem:[#allocation3 + $0x18] sm:$0xff]
      %v561 = vld [vmem:[#allocation3 + $0x20] sm:$0xff]
      %v562 = vld [vmem:[#allocation3 + $0x28] sm:$0xff]
      %563 = vrot.lane.b32.xlu0 %v345, 32
      %v564 = vpop.permute.xlu0 %563
      %565 = vrot.lane.b32.xlu0 %v346, 32
      %v566 = vpop.permute.xlu0 %565
      %vm567 = vcmask 261120
      %v568 = vsel %vm567, %v564, %v566
      %v572 = vmul.f32 %v557, %v564
      %v573 = vmul.f32 %v558, %v568
      %v574 = vmul.f32 %v559, %v566
      %v575 = vmul.f32 %v560, %v564
      %v576 = vmul.f32 %v561, %v568
      %v577 = vmul.f32 %v562, %v566
      %v578 = vpack.c.bf16 %v575, %v572
      %v579 = vpack.c.bf16 %v576, %v573
      %v580 = vpack.c.bf16 %v577, %v574
      %584 = vrot.lane.b32.xlu0 %v578, 96
      %v585 = vpop.permute.xlu0 %584
      %586 = vrot.lane.b32.xlu0 %v579, 96
      %v587 = vpop.permute.xlu0 %586
      %588 = vrot.lane.b32.xlu0 %v580, 96
      %v589 = vpop.permute.xlu0 %588
      %vm590 = vcmask 785408
      %v591 = vsel %vm590, %v585, %v587
      %v592 = vsel %vm590, %v587, %v589
      %595 = vst [vmem:[#allocation2 + $0x60] sm:$0xff] %v591
      %596 = vst [vmem:[#allocation2 + $0x68] sm:$0xff] %v592
      %v597 = vld [vmem:[#allocation3] sm:$0xff]
      %v598 = vld [vmem:[#allocation3 + $0x8] sm:$0xff]
      %v599 = vld [vmem:[#allocation3 + $0x10] sm:$0xff]
      %v600 = vld [vmem:[#allocation3 + $0x18] sm:$0xff]
      %v601 = vld [vmem:[#allocation3 + $0x20] sm:$0xff]
      %v602 = vld [vmem:[#allocation3 + $0x28] sm:$0xff]
      %v603 = vpack.c.bf16 %v600, %v597
      %v604 = vpack.c.bf16 %v601, %v598
      %v605 = vpack.c.bf16 %v602, %v599
      %609 = vrot.lane.b32.xlu0 %v603, 95
      %v610 = vpop.permute.xlu0 %609
      %611 = vrot.lane.b32.xlu0 %v604, 95
      %v612 = vpop.permute.xlu0 %611
      %613 = vrot.lane.b32.xlu0 %v605, 95
      %v614 = vpop.permute.xlu0 %613
      %vm615 = vcmask 777216
      %v616 = vsel %vm615, %v610, %v612
      %v617 = vsel %vm615, %v612, %v614
      %620 = vst [vmem:[#allocation2 + $0x70] sm:$0xff] %v616
      %621 = vst [vmem:[#allocation2 + $0x78] sm:$0xff] %v617
      %v622 = vld [vmem:[#allocation3] sm:$0xff]
      %v623 = vld [vmem:[#allocation3 + $0x8] sm:$0xff]
      %v624 = vld [vmem:[#allocation3 + $0x10] sm:$0xff]
      %v625 = vld [vmem:[#allocation3 + $0x18] sm:$0xff]
      %v626 = vld [vmem:[#allocation3 + $0x20] sm:$0xff]
      %v627 = vld [vmem:[#allocation3 + $0x28] sm:$0xff]
      %628 = vrot.lane.b32.xlu0 %v349, 34
      %v629 = vpop.permute.xlu0 %628
      %630 = vrot.lane.b32.xlu0 %v350, 34
      %v631 = vpop.permute.xlu0 %630
      %vm632 = vcmask 277504
      %v633 = vsel %vm632, %v629, %v631
      %v637 = vmul.f32 %v622, %v629
      %v638 = vmul.f32 %v623, %v633
      %v639 = vmul.f32 %v624, %v631
      %v640 = vmul.f32 %v625, %v629
      %v641 = vmul.f32 %v626, %v633
      %v642 = vmul.f32 %v627, %v631
      %v643 = vpack.c.bf16 %v640, %v637
      %v644 = vpack.c.bf16 %v641, %v638
      %v645 = vpack.c.bf16 %v642, %v639
      %649 = vrot.lane.b32.xlu0 %v643, 94
      %v650 = vpop.permute.xlu0 %649
      %651 = vrot.lane.b32.xlu0 %v644, 94
      %v652 = vpop.permute.xlu0 %651
      %653 = vrot.lane.b32.xlu0 %v645, 94
      %v654 = vpop.permute.xlu0 %653
      %vm655 = vcmask 769024
      %v656 = vsel %vm655, %v650, %v652
      %v657 = vsel %vm655, %v652, %v654
      %660 = vst [vmem:[#allocation2 + $0x80] sm:$0xff] %v656
      %661 = vst [vmem:[#allocation2 + $0x88] sm:$0xff] %v657
      %v662 = vld [vmem:[%s1] sm:$0xff]
      %v663 = vld [vmem:[%s1 + $0x8] sm:$0xff]
      %v664 = vld [vmem:[%s1 + $0x10] sm:$0xff]
      %v665 = vld [vmem:[%s1 + $0x18] sm:$0xff]
      %v666 = vld [vmem:[#allocation2] sm:$0xff]
      %v667 = vld [vmem:[#allocation2 + $0x8] sm:$0xff]
      %v668 = vld [vmem:[#allocation2 + $0x10] sm:$0xff]
      %v669 = vld [vmem:[#allocation2 + $0x18] sm:$0xff]
      %v670 = vld [vmem:[#allocation2 + $0x20] sm:$0xff]
      %v671 = vld [vmem:[#allocation2 + $0x28] sm:$0xff]
      %v672 = vld [vmem:[#allocation2 + $0x30] sm:$0xff]
      %v673 = vld [vmem:[#allocation2 + $0x38] sm:$0xff]
      %v674 = vld [vmem:[#allocation2 + $0x40] sm:$0xff]
      %v675 = vld [vmem:[#allocation2 + $0x48] sm:$0xff]
      %v676 = vld [vmem:[#allocation2 + $0x50] sm:$0xff]
      %v677 = vld [vmem:[#allocation2 + $0x58] sm:$0xff]
      %v678 = vld [vmem:[#allocation2 + $0x60] sm:$0xff]
      %v679 = vld [vmem:[#allocation2 + $0x68] sm:$0xff]
      %v680 = vld [vmem:[#allocation2 + $0x70] sm:$0xff]
      %v681 = vld [vmem:[#allocation2 + $0x78] sm:$0xff]
      %v682 = vld [vmem:[#allocation2 + $0x80] sm:$0xff]
      %v683 = vld [vmem:[#allocation2 + $0x88] sm:$0xff]
      %v688 = vunpack.c.l.b16 %v662
      %v689 = vunpack.c.h.b16 %v662
      %v690 = vunpack.c.l.b16 %v663
      %v691 = vunpack.c.h.b16 %v663
      %v692 = vunpack.c.l.b16 %v664
      %v693 = vunpack.c.h.b16 %v664
      %v694 = vunpack.c.l.b16 %v665
      %v695 = vunpack.c.h.b16 %v665
      %v696 = vpack.c.b16 %v690, %v688
      %v697 = vpack.c.b16 %v691, %v689
      %v698 = vpack.c.b16 %v694, %v692
      %v699 = vpack.c.b16 %v695, %v693
      %v703 = vsel %vm483, %v697, 0
      %v706 = vsel %vm483, %v699, 0
      %708 = vmatprep.subr.bf16.mxu0 %v667
      %709 = vmatpush1.bf16.msra.mxu0 %v666
      %710 = vmatprep.subr.bf16.mxu0 %v669
      %711 = vmatpush1.bf16.msra.mxu0 %v668
      %712 = vmatprep.subr.bf16.mxu0 %v671
      %713 = vmatpush1.bf16.msra.mxu0 %v670
      %714 = vmatprep.subr.bf16.mxu0 %v673
      %715 = vmatpush1.bf16.msra.mxu0 %v672
      %716 = vmatprep.subr.bf16.mxu0 %v675
      %717 = vmatpush1.bf16.msra.mxu0 %v674
      %718 = vmatprep.subr.bf16.mxu0 %v677
      %719 = vmatpush1.bf16.msra.mxu0 %v676
      %720 = vmatprep.subr.bf16.mxu0 %v679
      %721 = vmatpush1.bf16.msra.mxu0 %v678
      %722 = vmatprep.subr.bf16.mxu0 %v681
      %723 = vmatpush1.bf16.msra.mxu0 %v680
      %724 = vmatprep.subr.bf16.mxu0 %v683
      %725 = vmatpush1.bf16.msra.mxu0 %v682
      %726 = vmatprep.subr.bf16.mxu0 0
      %727 = vmatpush1.bf16.msra.mxu0 0
      %728 = vmatprep.subr.bf16.mxu0 0
      %729 = vmatpush1.bf16.msra.mxu0 0
      %730 = vmatprep.subr.bf16.mxu0 0
      %731 = vmatpush1.bf16.msra.mxu0 0
      %732 = vmatprep.subr.bf16.mxu0 0
      %733 = vmatpush1.bf16.msra.mxu0 0
      %734 = vmatprep.subr.bf16.mxu0 0
      %735 = vmatpush1.bf16.msra.mxu0 0
      %736 = vmatprep.subr.bf16.mxu0 0
      %737 = vmatpush1.bf16.msra.mxu0 0
      %738 = vmatprep.subr.bf16.mxu0 0
      %739 = vmatpush1.bf16.msra.mxu0 0
      %740 = vmatprep.mubr.bf16.mxu0 %v703
      %741 = vmatmul.mubr.bf16.gmra.mrb[0].mxu0 %v696
      %v742 = vpop.f32.mrb[0].mxu0
      %v743 = vadd.f32 0.0, %v742
      %v744 = vpop.f32.mrb[0].mxu0
      %v745 = vadd.f32 0.0, %v744
      %v746 = vpop.f32.mrb[0].mxu0
      %v747 = vadd.f32 0.0, %v746
      %v748 = vpop.f32.mrb[0].mxu0
      %v749 = vadd.f32 0.0, %v748
      %750 = vmatprep.mubr.bf16.mxu0 %v706
      %751 = vmatmul.mubr.bf16.gmra.mrb[0].mxu0 %v698
      %v752 = vpop.f32.mrb[0].mxu0
      %v753 = vadd.f32 0.0, %v752
      %v754 = vpop.f32.mrb[0].mxu0
      %v755 = vadd.f32 0.0, %v754
      %v756 = vpop.f32.mrb[0].mxu0
      %v757 = vadd.f32 0.0, %v756
      %v758 = vpop.f32.mrb[0].mxu0
      %v759 = vadd.f32 0.0, %v758
      %760 = vdwg.mxu0
      %v761 = vld [vmem:[%s2] sm:$0xff]
      %v762 = vld [vmem:[%s2 + $0x8] sm:$0xff]
      %v763 = vld [vmem:[%s2 + $0x10] sm:$0xff]
      %v764 = vld [vmem:[%s2 + $0x18] sm:$0xff]
      %766 = vset.pattern.permute.xlu0 0
      %767 = vperm.xlu0 %766, %v761
      %v768 = vpop.permute.xlu0 %767
      %771 = vset.pattern.permute.xlu0 0
      %772 = vperm.xlu0 %771, %v762
      %v773 = vpop.permute.xlu0 %772
      %776 = vset.pattern.permute.xlu0 0
      %777 = vperm.xlu0 %776, %v763
      %v778 = vpop.permute.xlu0 %777
      %781 = vset.pattern.permute.xlu0 0
      %782 = vperm.xlu0 %781, %v764
      %v783 = vpop.permute.xlu0 %782
      %v785 = vmul.f32 %v743, %v768
      %v786 = vmul.f32 %v745, %v768
      %v787 = vmul.f32 %v747, %v773
      %v788 = vmul.f32 %v749, %v773
      %v789 = vmul.f32 %v753, %v778
      %v790 = vmul.f32 %v755, %v778
      %v791 = vmul.f32 %v757, %v783
      %v792 = vmul.f32 %v759, %v783
      %v793 = vld [vmem:[%s3] sm:$0xff]
      %v794 = vld [vmem:[%s3 + $0x8] sm:$0xff]
      %v795 = vld [vmem:[%s3 + $0x10] sm:$0xff]
      %v796 = vld [vmem:[%s3 + $0x18] sm:$0xff]
      %798 = vset.pattern.permute.xlu0 0
      %799 = vperm.xlu0 %798, %v793
      %v800 = vpop.permute.xlu0 %799
      %803 = vset.pattern.permute.xlu0 0
      %804 = vperm.xlu0 %803, %v794
      %v805 = vpop.permute.xlu0 %804
      %808 = vset.pattern.permute.xlu0 0
      %809 = vperm.xlu0 %808, %v795
      %v810 = vpop.permute.xlu0 %809
      %813 = vset.pattern.permute.xlu0 0
      %814 = vperm.xlu0 %813, %v796
      %v815 = vpop.permute.xlu0 %814
      %v817 = vadd.f32 %v785, %v800
      %v818 = vadd.f32 %v786, %v800
      %v819 = vadd.f32 %v787, %v805
      %v820 = vadd.f32 %v788, %v805
      %v821 = vadd.f32 %v789, %v810
      %v822 = vadd.f32 %v790, %v810
      %v823 = vadd.f32 %v791, %v815
      %v824 = vadd.f32 %v792, %v815
      %v825 = vmax.f32 %v817, 0.0
      %v826 = vmax.f32 %v818, 0.0
      %v827 = vmax.f32 %v819, 0.0
      %v828 = vmax.f32 %v820, 0.0
      %v829 = vmax.f32 %v821, 0.0
      %v830 = vmax.f32 %v822, 0.0
      %v831 = vmax.f32 %v823, 0.0
      %v832 = vmax.f32 %v824, 0.0
      %841 = vrot.lane.b32.xlu0 %v825, 17
      %v842 = vpop.permute.xlu0 %841
      %843 = vrot.lane.b32.xlu0 %v826, 17
      %v844 = vpop.permute.xlu0 %843
      %845 = vrot.lane.b32.xlu0 %v827, 17
      %v846 = vpop.permute.xlu0 %845
      %847 = vrot.lane.b32.xlu0 %v828, 17
      %v848 = vpop.permute.xlu0 %847
      %849 = vrot.lane.b32.xlu0 %v829, 17
      %v850 = vpop.permute.xlu0 %849
      %851 = vrot.lane.b32.xlu0 %v830, 17
      %v852 = vpop.permute.xlu0 %851
      %853 = vrot.lane.b32.xlu0 %v831, 17
      %v854 = vpop.permute.xlu0 %853
      %855 = vrot.lane.b32.xlu0 %v832, 17
      %v856 = vpop.permute.xlu0 %855
      %v857 = vsel %vm351, %v842, %v844
      %v858 = vsel %vm351, %v846, %v848
      %v859 = vsel %vm351, %v850, %v852
      %v860 = vsel %vm351, %v854, %v856
      %873 = vst.msk [vmem:[#allocation3] sm:$0xff] %vm385, %v842
      %874 = vst [vmem:[#allocation3 + $0x8] sm:$0xff] %v857
      %875 = vst.msk [vmem:[#allocation3 + $0x10] sm:$0xff] %vm351, %v844
      %876 = vst.msk [vmem:[#allocation3 + $0x18] sm:$0xff] %vm385, %v846
      %877 = vst [vmem:[#allocation3 + $0x20] sm:$0xff] %v858
      %878 = vst.msk [vmem:[#allocation3 + $0x28] sm:$0xff] %vm351, %v848
      %879 = vst.msk [vmem:[#allocation3 + $0x30] sm:$0xff] %vm385, %v850
      %880 = vst [vmem:[#allocation3 + $0x38] sm:$0xff] %v859
      %881 = vst.msk [vmem:[#allocation3 + $0x40] sm:$0xff] %vm351, %v852
      %882 = vst.msk [vmem:[#allocation3 + $0x48] sm:$0xff] %vm385, %v854
      %883 = vst [vmem:[#allocation3 + $0x50] sm:$0xff] %v860
      %884 = vst.msk [vmem:[#allocation3 + $0x58] sm:$0xff] %vm351, %v856
      %v885 = vld [vmem:[#allocation3] sm:$0xff]
      %v886 = vld [vmem:[#allocation3 + $0x8] sm:$0xff]
      %v887 = vld [vmem:[#allocation3 + $0x18] sm:$0xff]
      %v888 = vld [vmem:[#allocation3 + $0x20] sm:$0xff]
      %v889 = vld [vmem:[#allocation3 + $0x30] sm:$0xff]
      %v890 = vld [vmem:[#allocation3 + $0x38] sm:$0xff]
      %v891 = vld [vmem:[#allocation3 + $0x48] sm:$0xff]
      %v892 = vld [vmem:[#allocation3 + $0x50] sm:$0xff]
      %v893 = vmul.f32 %v885, %v345
      %v894 = vmul.f32 %v886, %v346
      %v895 = vmul.f32 %v887, %v345
      %v896 = vmul.f32 %v888, %v346
      %v897 = vmul.f32 %v889, %v345
      %v898 = vmul.f32 %v890, %v346
      %v899 = vmul.f32 %v891, %v345
      %v900 = vmul.f32 %v892, %v346
      %v901 = vpack.c.bf16 %v895, %v893
      %v902 = vpack.c.bf16 %v896, %v894
      %v903 = vpack.c.bf16 %v899, %v897
      %v904 = vpack.c.bf16 %v900, %v898
      %905 = vst [vmem:[#allocation2] sm:$0xff] %v901
      %906 = vst [vmem:[#allocation2 + $0x8] sm:$0xff] %v902
      %907 = vst [vmem:[#allocation2 + $0x10] sm:$0xff] %v903
      %908 = vst [vmem:[#allocation2 + $0x18] sm:$0xff] %v904
      %v909 = vld [vmem:[#allocation3] sm:$0xff]
      %v910 = vld [vmem:[#allocation3 + $0x8] sm:$0xff]
      %v911 = vld [vmem:[#allocation3 + $0x10] sm:$0xff]
      %v912 = vld [vmem:[#allocation3 + $0x18] sm:$0xff]
      %v913 = vld [vmem:[#allocation3 + $0x20] sm:$0xff]
      %v914 = vld [vmem:[#allocation3 + $0x28] sm:$0xff]
      %v915 = vld [vmem:[#allocation3 + $0x30] sm:$0xff]
      %v916 = vld [vmem:[#allocation3 + $0x38] sm:$0xff]
      %v917 = vld [vmem:[#allocation3 + $0x40] sm:$0xff]
      %v918 = vld [vmem:[#allocation3 + $0x48] sm:$0xff]
      %v919 = vld [vmem:[#allocation3 + $0x50] sm:$0xff]
      %v920 = vld [vmem:[#allocation3 + $0x58] sm:$0xff]
      %v921 = vpack.c.bf16 %v912, %v909
      %v922 = vpack.c.bf16 %v913, %v910
      %v923 = vpack.c.bf16 %v914, %v911
      %v924 = vpack.c.bf16 %v918, %v915
      %v925 = vpack.c.bf16 %v919, %v916
      %v926 = vpack.c.bf16 %v920, %v917
      %933 = vrot.lane.b32.xlu0 %v921, 127
      %v934 = vpop.permute.xlu0 %933
      %935 = vrot.lane.b32.xlu0 %v922, 127
      %v936 = vpop.permute.xlu0 %935
      %937 = vrot.lane.b32.xlu0 %v923, 127
      %v938 = vpop.permute.xlu0 %937
      %939 = vrot.lane.b32.xlu0 %v924, 127
      %v940 = vpop.permute.xlu0 %939
      %941 = vrot.lane.b32.xlu0 %v925, 127
      %v942 = vpop.permute.xlu0 %941
      %943 = vrot.lane.b32.xlu0 %v926, 127
      %v944 = vpop.permute.xlu0 %943
      %v945 = vsel %vm422, %v934, %v936
      %v946 = vsel %vm422, %v936, %v938
      %v947 = vsel %vm422, %v940, %v942
      %v948 = vsel %vm422, %v942, %v944
      %953 = vst [vmem:[#allocation2 + $0x20] sm:$0xff] %v945
      %954 = vst [vmem:[#allocation2 + $0x28] sm:$0xff] %v946
      %955 = vst [vmem:[#allocation2 + $0x30] sm:$0xff] %v947
      %956 = vst [vmem:[#allocation2 + $0x38] sm:$0xff] %v948
      %v957 = vld [vmem:[#allocation3] sm:$0xff]
      %v958 = vld [vmem:[#allocation3 + $0x8] sm:$0xff]
      %v959 = vld [vmem:[#allocation3 + $0x10] sm:$0xff]
      %v960 = vld [vmem:[#allocation3 + $0x18] sm:$0xff]
      %v961 = vld [vmem:[#allocation3 + $0x20] sm:$0xff]
      %v962 = vld [vmem:[#allocation3 + $0x28] sm:$0xff]
      %v963 = vld [vmem:[#allocation3 + $0x30] sm:$0xff]
      %v964 = vld [vmem:[#allocation3 + $0x38] sm:$0xff]
      %v965 = vld [vmem:[#allocation3 + $0x40] sm:$0xff]
      %v966 = vld [vmem:[#allocation3 + $0x48] sm:$0xff]
      %v967 = vld [vmem:[#allocation3 + $0x50] sm:$0xff]
      %v968 = vld [vmem:[#allocation3 + $0x58] sm:$0xff]
      %v969 = vmul.f32 %v957, %v438
      %v970 = vmul.f32 %v958, %v442
      %v971 = vmul.f32 %v959, %v440
      %v972 = vmul.f32 %v960, %v438
      %v973 = vmul.f32 %v961, %v442
      %v974 = vmul.f32 %v962, %v440
      %v975 = vmul.f32 %v963, %v438
      %v976 = vmul.f32 %v964, %v442
      %v977 = vmul.f32 %v965, %v440
      %v978 = vmul.f32 %v966, %v438
      %v979 = vmul.f32 %v967, %v442
      %v980 = vmul.f32 %v968, %v440
      %v981 = vpack.c.bf16 %v972, %v969
      %v982 = vpack.c.bf16 %v973, %v970
      %v983 = vpack.c.bf16 %v974, %v971
      %v984 = vpack.c.bf16 %v978, %v975
      %v985 = vpack.c.bf16 %v979, %v976
      %v986 = vpack.c.bf16 %v980, %v977
      %993 = vrot.lane.b32.xlu0 %v981, 126
      %v994 = vpop.permute.xlu0 %993
      %995 = vrot.lane.b32.xlu0 %v982, 126
      %v996 = vpop.permute.xlu0 %995
      %997 = vrot.lane.b32.xlu0 %v983, 126
      %v998 = vpop.permute.xlu0 %997
      %999 = vrot.lane.b32.xlu0 %v984, 126
      %v1000 = vpop.permute.xlu0 %999
      %1001 = vrot.lane.b32.xlu0 %v985, 126
      %v1002 = vpop.permute.xlu0 %1001
      %1003 = vrot.lane.b32.xlu0 %v986, 126
      %v1004 = vpop.permute.xlu0 %1003
      %v1005 = vsel %vm464, %v994, %v996
      %v1006 = vsel %vm464, %v996, %v998
      %v1007 = vsel %vm464, %v1000, %v1002
      %v1008 = vsel %vm464, %v1002, %v1004
      %1013 = vst [vmem:[#allocation2 + $0x40] sm:$0xff] %v1005
      %1014 = vst [vmem:[#allocation2 + $0x48] sm:$0xff] %v1006
      %1015 = vst [vmem:[#allocation2 + $0x50] sm:$0xff] %v1007
      %1016 = vst [vmem:[#allocation2 + $0x58] sm:$0xff] %v1008
      %v1017 = vld [vmem:[#allocation3] sm:$0xff]
      %v1018 = vld [vmem:[#allocation3 + $0x8] sm:$0xff]
      %v1019 = vld [vmem:[#allocation3 + $0x10] sm:$0xff]
      %v1020 = vld [vmem:[#allocation3 + $0x18] sm:$0xff]
      %v1021 = vld [vmem:[#allocation3 + $0x20] sm:$0xff]
      %v1022 = vld [vmem:[#allocation3 + $0x28] sm:$0xff]
      %v1023 = vld [vmem:[#allocation3 + $0x30] sm:$0xff]
      %v1024 = vld [vmem:[#allocation3 + $0x38] sm:$0xff]
      %v1025 = vld [vmem:[#allocation3 + $0x40] sm:$0xff]
      %v1026 = vld [vmem:[#allocation3 + $0x48] sm:$0xff]
      %v1027 = vld [vmem:[#allocation3 + $0x50] sm:$0xff]
      %v1028 = vld [vmem:[#allocation3 + $0x58] sm:$0xff]
      %v1029 = vmul.f32 %v1017, %v480
      %v1030 = vmul.f32 %v1018, %v484
      %v1031 = vmul.f32 %v1019, %v482
      %v1032 = vmul.f32 %v1020, %v480
      %v1033 = vmul.f32 %v1021, %v484
      %v1034 = vmul.f32 %v1022, %v482
      %v1035 = vmul.f32 %v1023, %v480
      %v1036 = vmul.f32 %v1024, %v484
      %v1037 = vmul.f32 %v1025, %v482
      %v1038 = vmul.f32 %v1026, %v480
      %v1039 = vmul.f32 %v1027, %v484
      %v1040 = vmul.f32 %v1028, %v482
      %v1041 = vpack.c.bf16 %v1032, %v1029
      %v1042 = vpack.c.bf16 %v1033, %v1030
      %v1043 = vpack.c.bf16 %v1034, %v1031
      %v1044 = vpack.c.bf16 %v1038, %v1035
      %v1045 = vpack.c.bf16 %v1039, %v1036
      %v1046 = vpack.c.bf16 %v1040, %v1037
      %1053 = vrot.lane.b32.xlu0 %v1041, 112
      %v1054 = vpop.permute.xlu0 %1053
      %1055 = vrot.lane.b32.xlu0 %v1042, 112
      %v1056 = vpop.permute.xlu0 %1055
      %1057 = vrot.lane.b32.xlu0 %v1043, 112
      %v1058 = vpop.permute.xlu0 %1057
      %1059 = vrot.lane.b32.xlu0 %v1044, 112
      %v1060 = vpop.permute.xlu0 %1059
      %1061 = vrot.lane.b32.xlu0 %v1045, 112
      %v1062 = vpop.permute.xlu0 %1061
      %1063 = vrot.lane.b32.xlu0 %v1046, 112
      %v1064 = vpop.permute.xlu0 %1063
      %v1065 = vsel %vm506, %v1054, %v1056
      %v1066 = vsel %vm506, %v1056, %v1058
      %v1067 = vsel %vm506, %v1060, %v1062
      %v1068 = vsel %vm506, %v1062, %v1064
      %1073 = vst [vmem:[#allocation2 + $0x60] sm:$0xff] %v1065
      %1074 = vst [vmem:[#allocation2 + $0x68] sm:$0xff] %v1066
      %1075 = vst [vmem:[#allocation2 + $0x70] sm:$0xff] %v1067
      %1076 = vst [vmem:[#allocation2 + $0x78] sm:$0xff] %v1068
      %v1077 = vpack.c.bf16 %v827, %v825
      %v1078 = vpack.c.bf16 %v828, %v826
      %v1079 = vpack.c.bf16 %v831, %v829
      %v1080 = vpack.c.bf16 %v832, %v830
      %1081 = vst [vmem:[#allocation2 + $0x80] sm:$0xff] %v1077
      %1082 = vst [vmem:[#allocation2 + $0x88] sm:$0xff] %v1078
      %1083 = vst [vmem:[#allocation2 + $0x90] sm:$0xff] %v1079
      %1084 = vst [vmem:[#allocation2 + $0x98] sm:$0xff] %v1080
      %v1085 = vld [vmem:[#allocation3] sm:$0xff]
      %v1086 = vld [vmem:[#allocation3 + $0x8] sm:$0xff]
      %v1087 = vld [vmem:[#allocation3 + $0x10] sm:$0xff]
      %v1088 = vld [vmem:[#allocation3 + $0x18] sm:$0xff]
      %v1089 = vld [vmem:[#allocation3 + $0x20] sm:$0xff]
      %v1090 = vld [vmem:[#allocation3 + $0x28] sm:$0xff]
      %v1091 = vld [vmem:[#allocation3 + $0x30] sm:$0xff]
      %v1092 = vld [vmem:[#allocation3 + $0x38] sm:$0xff]
      %v1093 = vld [vmem:[#allocation3 + $0x40] sm:$0xff]
      %v1094 = vld [vmem:[#allocation3 + $0x48] sm:$0xff]
      %v1095 = vld [vmem:[#allocation3 + $0x50] sm:$0xff]
      %v1096 = vld [vmem:[#allocation3 + $0x58] sm:$0xff]
      %v1097 = vmul.f32 %v1085, %v524
      %v1098 = vmul.f32 %v1086, %v528
      %v1099 = vmul.f32 %v1087, %v526
      %v1100 = vmul.f32 %v1088, %v524
      %v1101 = vmul.f32 %v1089, %v528
      %v1102 = vmul.f32 %v1090, %v526
      %v1103 = vmul.f32 %v1091, %v524
      %v1104 = vmul.f32 %v1092, %v528
      %v1105 = vmul.f32 %v1093, %v526
      %v1106 = vmul.f32 %v1094, %v524
      %v1107 = vmul.f32 %v1095, %v528
      %v1108 = vmul.f32 %v1096, %v526
      %v1109 = vpack.c.bf16 %v1100, %v1097
      %v1110 = vpack.c.bf16 %v1101, %v1098
      %v1111 = vpack.c.bf16 %v1102, %v1099
      %v1112 = vpack.c.bf16 %v1106, %v1103
      %v1113 = vpack.c.bf16 %v1107, %v1104
      %v1114 = vpack.c.bf16 %v1108, %v1105
      %1121 = vrot.lane.b32.xlu0 %v1109, 110
      %v1122 = vpop.permute.xlu0 %1121
      %1123 = vrot.lane.b32.xlu0 %v1110, 110
      %v1124 = vpop.permute.xlu0 %1123
      %1125 = vrot.lane.b32.xlu0 %v1111, 110
      %v1126 = vpop.permute.xlu0 %1125
      %1127 = vrot.lane.b32.xlu0 %v1112, 110
      %v1128 = vpop.permute.xlu0 %1127
      %1129 = vrot.lane.b32.xlu0 %v1113, 110
      %v1130 = vpop.permute.xlu0 %1129
      %1131 = vrot.lane.b32.xlu0 %v1114, 110
      %v1132 = vpop.permute.xlu0 %1131
      %v1133 = vsel %vm550, %v1122, %v1124
      %v1134 = vsel %vm550, %v1124, %v1126
      %v1135 = vsel %vm550, %v1128, %v1130
      %v1136 = vsel %vm550, %v1130, %v1132
      %1141 = vst [vmem:[#allocation2 + $0xa0] sm:$0xff] %v1133
      %1142 = vst [vmem:[#allocation2 + $0xa8] sm:$0xff] %v1134
      %1143 = vst [vmem:[#allocation2 + $0xb0] sm:$0xff] %v1135
      %1144 = vst [vmem:[#allocation2 + $0xb8] sm:$0xff] %v1136
      %v1145 = vld [vmem:[#allocation3] sm:$0xff]
      %v1146 = vld [vmem:[#allocation3 + $0x8] sm:$0xff]
      %v1147 = vld [vmem:[#allocation3 + $0x10] sm:$0xff]
      %v1148 = vld [vmem:[#allocation3 + $0x18] sm:$0xff]
      %v1149 = vld [vmem:[#allocation3 + $0x20] sm:$0xff]
      %v1150 = vld [vmem:[#allocation3 + $0x28] sm:$0xff]
      %v1151 = vld [vmem:[#allocation3 + $0x30] sm:$0xff]
      %v1152 = vld [vmem:[#allocation3 + $0x38] sm:$0xff]
      %v1153 = vld [vmem:[#allocation3 + $0x40] sm:$0xff]
      %v1154 = vld [vmem:[#allocation3 + $0x48] sm:$0xff]
      %v1155 = vld [vmem:[#allocation3 + $0x50] sm:$0xff]
      %v1156 = vld [vmem:[#allocation3 + $0x58] sm:$0xff]
      %v1157 = vmul.f32 %v1145, %v564
      %v1158 = vmul.f32 %v1146, %v568
      %v1159 = vmul.f32 %v1147, %v566
      %v1160 = vmul.f32 %v1148, %v564
      %v1161 = vmul.f32 %v1149, %v568
      %v1162 = vmul.f32 %v1150, %v566
      %v1163 = vmul.f32 %v1151, %v564
      %v1164 = vmul.f32 %v1152, %v568
      %v1165 = vmul.f32 %v1153, %v566
      %v1166 = vmul.f32 %v1154, %v564
      %v1167 = vmul.f32 %v1155, %v568
      %v1168 = vmul.f32 %v1156, %v566
      %v1169 = vpack.c.bf16 %v1160, %v1157
      %v1170 = vpack.c.bf16 %v1161, %v1158
      %v1171 = vpack.c.bf16 %v1162, %v1159
      %v1172 = vpack.c.bf16 %v1166, %v1163
      %v1173 = vpack.c.bf16 %v1167, %v1164
      %v1174 = vpack.c.bf16 %v1168, %v1165
      %1181 = vrot.lane.b32.xlu0 %v1169, 96
      %v1182 = vpop.permute.xlu0 %1181
      %1183 = vrot.lane.b32.xlu0 %v1170, 96
      %v1184 = vpop.permute.xlu0 %1183
      %1185 = vrot.lane.b32.xlu0 %v1171, 96
      %v1186 = vpop.permute.xlu0 %1185
      %1187 = vrot.lane.b32.xlu0 %v1172, 96
      %v1188 = vpop.permute.xlu0 %1187
      %1189 = vrot.lane.b32.xlu0 %v1173, 96
      %v1190 = vpop.permute.xlu0 %1189
      %1191 = vrot.lane.b32.xlu0 %v1174, 96
      %v1192 = vpop.permute.xlu0 %1191
      %v1193 = vsel %vm590, %v1182, %v1184
      %v1194 = vsel %vm590, %v1184, %v1186
      %v1195 = vsel %vm590, %v1188, %v1190
      %v1196 = vsel %vm590, %v1190, %v1192
      %1201 = vst [vmem:[#allocation2 + $0xc0] sm:$0xff] %v1193
      %1202 = vst [vmem:[#allocation2 + $0xc8] sm:$0xff] %v1194
      %1203 = vst [vmem:[#allocation2 + $0xd0] sm:$0xff] %v1195
      %1204 = vst [vmem:[#allocation2 + $0xd8] sm:$0xff] %v1196
      %v1205 = vld [vmem:[#allocation3] sm:$0xff]
      %v1206 = vld [vmem:[#allocation3 + $0x8] sm:$0xff]
      %v1207 = vld [vmem:[#allocation3 + $0x10] sm:$0xff]
      %v1208 = vld [vmem:[#allocation3 + $0x18] sm:$0xff]
      %v1209 = vld [vmem:[#allocation3 + $0x20] sm:$0xff]
      %v1210 = vld [vmem:[#allocation3 + $0x28] sm:$0xff]
      %v1211 = vld [vmem:[#allocation3 + $0x30] sm:$0xff]
      %v1212 = vld [vmem:[#allocation3 + $0x38] sm:$0xff]
      %v1213 = vld [vmem:[#allocation3 + $0x40] sm:$0xff]
      %v1214 = vld [vmem:[#allocation3 + $0x48] sm:$0xff]
      %v1215 = vld [vmem:[#allocation3 + $0x50] sm:$0xff]
      %v1216 = vld [vmem:[#allocation3 + $0x58] sm:$0xff]
      %v1217 = vpack.c.bf16 %v1208, %v1205
      %v1218 = vpack.c.bf16 %v1209, %v1206
      %v1219 = vpack.c.bf16 %v1210, %v1207
      %v1220 = vpack.c.bf16 %v1214, %v1211
      %v1221 = vpack.c.bf16 %v1215, %v1212
      %v1222 = vpack.c.bf16 %v1216, %v1213
      %1229 = vrot.lane.b32.xlu0 %v1217, 95
      %v1230 = vpop.permute.xlu0 %1229
      %1231 = vrot.lane.b32.xlu0 %v1218, 95
      %v1232 = vpop.permute.xlu0 %1231
      %1233 = vrot.lane.b32.xlu0 %v1219, 95
      %v1234 = vpop.permute.xlu0 %1233
      %1235 = vrot.lane.b32.xlu0 %v1220, 95
      %v1236 = vpop.permute.xlu0 %1235
      %1237 = vrot.lane.b32.xlu0 %v1221, 95
      %v1238 = vpop.permute.xlu0 %1237
      %1239 = vrot.lane.b32.xlu0 %v1222, 95
      %v1240 = vpop.permute.xlu0 %1239
      %v1241 = vsel %vm615, %v1230, %v1232
      %v1242 = vsel %vm615, %v1232, %v1234
      %v1243 = vsel %vm615, %v1236, %v1238
      %v1244 = vsel %vm615, %v1238, %v1240
      %1249 = vst [vmem:[#allocation2 + $0xe0] sm:$0xff] %v1241
      %1250 = vst [vmem:[#allocation2 + $0xe8] sm:$0xff] %v1242
      %1251 = vst [vmem:[#allocation2 + $0xf0] sm:$0xff] %v1243
      %1252 = vst [vmem:[#allocation2 + $0xf8] sm:$0xff] %v1244
      %v1253 = vld [vmem:[#allocation3] sm:$0xff]
      %v1254 = vld [vmem:[#allocation3 + $0x8] sm:$0xff]
      %v1255 = vld [vmem:[#allocation3 + $0x10] sm:$0xff]
      %v1256 = vld [vmem:[#allocation3 + $0x18] sm:$0xff]
      %v1257 = vld [vmem:[#allocation3 + $0x20] sm:$0xff]
      %v1258 = vld [vmem:[#allocation3 + $0x28] sm:$0xff]
      %v1259 = vld [vmem:[#allocation3 + $0x30] sm:$0xff]
      %v1260 = vld [vmem:[#allocation3 + $0x38] sm:$0xff]
      %v1261 = vld [vmem:[#allocation3 + $0x40] sm:$0xff]
      %v1262 = vld [vmem:[#allocation3 + $0x48] sm:$0xff]
      %v1263 = vld [vmem:[#allocation3 + $0x50] sm:$0xff]
      %v1264 = vld [vmem:[#allocation3 + $0x58] sm:$0xff]
      %v1265 = vmul.f32 %v1253, %v629
      %v1266 = vmul.f32 %v1254, %v633
      %v1267 = vmul.f32 %v1255, %v631
      %v1268 = vmul.f32 %v1256, %v629
      %v1269 = vmul.f32 %v1257, %v633
      %v1270 = vmul.f32 %v1258, %v631
      %v1271 = vmul.f32 %v1259, %v629
      %v1272 = vmul.f32 %v1260, %v633
      %v1273 = vmul.f32 %v1261, %v631
      %v1274 = vmul.f32 %v1262, %v629
      %v1275 = vmul.f32 %v1263, %v633
      %v1276 = vmul.f32 %v1264, %v631
      %v1277 = vpack.c.bf16 %v1268, %v1265
      %v1278 = vpack.c.bf16 %v1269, %v1266
      %v1279 = vpack.c.bf16 %v1270, %v1267
      %v1280 = vpack.c.bf16 %v1274, %v1271
      %v1281 = vpack.c.bf16 %v1275, %v1272
      %v1282 = vpack.c.bf16 %v1276, %v1273
      %1289 = vrot.lane.b32.xlu0 %v1277, 94
      %v1290 = vpop.permute.xlu0 %1289
      %1291 = vrot.lane.b32.xlu0 %v1278, 94
      %v1292 = vpop.permute.xlu0 %1291
      %1293 = vrot.lane.b32.xlu0 %v1279, 94
      %v1294 = vpop.permute.xlu0 %1293
      %1295 = vrot.lane.b32.xlu0 %v1280, 94
      %v1296 = vpop.permute.xlu0 %1295
      %1297 = vrot.lane.b32.xlu0 %v1281, 94
      %v1298 = vpop.permute.xlu0 %1297
      %1299 = vrot.lane.b32.xlu0 %v1282, 94
      %v1300 = vpop.permute.xlu0 %1299
      %v1301 = vsel %vm655, %v1290, %v1292
      %v1302 = vsel %vm655, %v1292, %v1294
      %v1303 = vsel %vm655, %v1296, %v1298
      %v1304 = vsel %vm655, %v1298, %v1300
      %1309 = vst [vmem:[#allocation2 + $0x100] sm:$0xff] %v1301
      %1310 = vst [vmem:[#allocation2 + $0x108] sm:$0xff] %v1302
      %1311 = vst [vmem:[#allocation2 + $0x110] sm:$0xff] %v1303
      %1312 = vst [vmem:[#allocation2 + $0x118] sm:$0xff] %v1304
      %v1313 = vpack.c.bf16 %v336, %v334
      %v1314 = vpack.c.bf16 %v337, %v335
      %1315 = vst [vmem:[#allocation2 + $0x120] sm:$0xff] %v1313
      %1316 = vst [vmem:[#allocation2 + $0x128] sm:$0xff] %v1314
      %v1317 = vld [vmem:[%s4] sm:$0xff]
      %v1318 = vld [vmem:[%s4 + $0x8] sm:$0xf]
      %v1319 = vld [vmem:[%s4 + $0xc] sm:$0xff]
      %v1320 = vld [vmem:[%s4 + $0x14] sm:$0xf]
      %v1321 = vld [vmem:[%s4 + $0x18] sm:$0xff]
      %v1322 = vld [vmem:[%s4 + $0x20] sm:$0xf]
      %v1323 = vld [vmem:[%s4 + $0x24] sm:$0xff]
      %v1324 = vld [vmem:[%s4 + $0x2c] sm:$0xf]
      %v1325 = vld [vmem:[%s4 + $0x30] sm:$0xff]
      %v1326 = vld [vmem:[%s4 + $0x38] sm:$0xf]
      %v1327 = vld [vmem:[%s4 + $0x3c] sm:$0xff]
      %v1328 = vld [vmem:[%s4 + $0x44] sm:$0xf]
      %v1329 = vld [vmem:[%s4 + $0x48] sm:$0xff]
      %v1330 = vld [vmem:[%s4 + $0x50] sm:$0xf]
      %v1331 = vld [vmem:[%s4 + $0x54] sm:$0xff]
      %v1332 = vld [vmem:[%s4 + $0x5c] sm:$0xf]
      %v1333 = vld [vmem:[#allocation2] sm:$0xff]
      %v1334 = vld [vmem:[#allocation2 + $0x8] sm:$0xff]
      %v1335 = vld [vmem:[#allocation2 + $0x10] sm:$0xff]
      %v1336 = vld [vmem:[#allocation2 + $0x18] sm:$0xff]
      %v1337 = vld [vmem:[#allocation2 + $0x20] sm:$0xff]
      %v1338 = vld [vmem:[#allocation2 + $0x28] sm:$0xff]
      %v1339 = vld [vmem:[#allocation2 + $0x30] sm:$0xff]
      %v1340 = vld [vmem:[#allocation2 + $0x38] sm:$0xff]
      %v1341 = vld [vmem:[#allocation2 + $0x40] sm:$0xff]
      %v1342 = vld [vmem:[#allocation2 + $0x48] sm:$0xff]
      %v1343 = vld [vmem:[#allocation2 + $0x50] sm:$0xff]
      %v1344 = vld [vmem:[#allocation2 + $0x58] sm:$0xff]
      %v1345 = vld [vmem:[#allocation2 + $0x60] sm:$0xff]
      %v1346 = vld [vmem:[#allocation2 + $0x68] sm:$0xff]
      %v1347 = vld [vmem:[#allocation2 + $0x70] sm:$0xff]
      %v1348 = vld [vmem:[#allocation2 + $0x78] sm:$0xff]
      %v1349 = vld [vmem:[#allocation2 + $0x80] sm:$0xff]
      %v1350 = vld [vmem:[#allocation2 + $0x88] sm:$0xff]
      %v1351 = vld [vmem:[#allocation2 + $0x90] sm:$0xff]
      %v1352 = vld [vmem:[#allocation2 + $0x98] sm:$0xff]
      %v1353 = vld [vmem:[#allocation2 + $0xa0] sm:$0xff]
      %v1354 = vld [vmem:[#allocation2 + $0xa8] sm:$0xff]
      %v1355 = vld [vmem:[#allocation2 + $0xb0] sm:$0xff]
      %v1356 = vld [vmem:[#allocation2 + $0xb8] sm:$0xff]
      %v1357 = vld [vmem:[#allocation2 + $0xc0] sm:$0xff]
      %v1358 = vld [vmem:[#allocation2 + $0xc8] sm:$0xff]
      %v1359 = vld [vmem:[#allocation2 + $0xd0] sm:$0xff]
      %v1360 = vld [vmem:[#allocation2 + $0xd8] sm:$0xff]
      %v1361 = vld [vmem:[#allocation2 + $0xe0] sm:$0xff]
      %v1362 = vld [vmem:[#allocation2 + $0xe8] sm:$0xff]
      %v1363 = vld [vmem:[#allocation2 + $0xf0] sm:$0xff]
      %v1364 = vld [vmem:[#allocation2 + $0xf8] sm:$0xff]
      %v1365 = vld [vmem:[#allocation2 + $0x100] sm:$0xff]
      %v1366 = vld [vmem:[#allocation2 + $0x108] sm:$0xff]
      %v1367 = vld [vmem:[#allocation2 + $0x110] sm:$0xff]
      %v1368 = vld [vmem:[#allocation2 + $0x118] sm:$0xff]
      %v1369 = vld [vmem:[#allocation2 + $0x120] sm:$0xff]
      %v1370 = vld [vmem:[#allocation2 + $0x128] sm:$0xff]
      %v1387 = vunpack.c.l.b16 %v1317
      %v1388 = vunpack.c.h.b16 %v1317
      %v1389 = vunpack.c.l.b16 %v1318
      %v1390 = vunpack.c.l.b16 %v1319
      %v1391 = vunpack.c.h.b16 %v1319
      %v1392 = vunpack.c.l.b16 %v1320
      %v1393 = vunpack.c.l.b16 %v1321
      %v1394 = vunpack.c.h.b16 %v1321
      %v1395 = vunpack.c.l.b16 %v1322
      %v1396 = vunpack.c.l.b16 %v1323
      %v1397 = vunpack.c.h.b16 %v1323
      %v1398 = vunpack.c.l.b16 %v1324
      %v1399 = vunpack.c.l.b16 %v1325
      %v1400 = vunpack.c.h.b16 %v1325
      %v1401 = vunpack.c.l.b16 %v1326
      %v1402 = vunpack.c.l.b16 %v1327
      %v1403 = vunpack.c.h.b16 %v1327
      %v1404 = vunpack.c.l.b16 %v1328
      %v1405 = vunpack.c.l.b16 %v1329
      %v1406 = vunpack.c.h.b16 %v1329
      %v1407 = vunpack.c.l.b16 %v1330
      %v1408 = vunpack.c.l.b16 %v1331
      %v1409 = vunpack.c.h.b16 %v1331
      %v1410 = vunpack.c.l.b16 %v1332
      %v1411 = vpack.c.b16 %v1390, %v1387
      %v1412 = vpack.c.b16 %v1391, %v1388
      %v1413 = vpack.c.b16 %v1392, %v1389
      %v1414 = vpack.c.b16 %v1396, %v1393
      %v1415 = vpack.c.b16 %v1397, %v1394
      %v1416 = vpack.c.b16 %v1398, %v1395
      %v1417 = vpack.c.b16 %v1402, %v1399
      %v1418 = vpack.c.b16 %v1403, %v1400
      %v1419 = vpack.c.b16 %v1404, %v1401
      %v1420 = vpack.c.b16 %v1408, %v1405
      %v1421 = vpack.c.b16 %v1409, %v1406
      %v1422 = vpack.c.b16 %v1410, %v1407
      %vm1431 = vcmask 392192
      %v1433 = vsel %vm1431, %v1413, 0
      %v1436 = vsel %vm1431, %v1416, 0
      %v1439 = vsel %vm1431, %v1419, 0
      %v1442 = vsel %vm1431, %v1422, 0
      %1444 = vmatprep.subr.bf16.mxu0 %v1334
      %1445 = vmatpush1.bf16.msra.mxu0 %v1333
      %1446 = vmatprep.subr.bf16.mxu0 %v1336
      %1447 = vmatpush1.bf16.msra.mxu0 %v1335
      %1448 = vmatprep.subr.bf16.mxu0 %v1338
      %1449 = vmatpush1.bf16.msra.mxu0 %v1337
      %1450 = vmatprep.subr.bf16.mxu0 %v1340
      %1451 = vmatpush1.bf16.msra.mxu0 %v1339
      %1452 = vmatprep.subr.bf16.mxu0 %v1342
      %1453 = vmatpush1.bf16.msra.mxu0 %v1341
      %1454 = vmatprep.subr.bf16.mxu0 %v1344
      %1455 = vmatpush1.bf16.msra.mxu0 %v1343
      %1456 = vmatprep.subr.bf16.mxu0 %v1346
      %1457 = vmatpush1.bf16.msra.mxu0 %v1345
      %1458 = vmatprep.subr.bf16.mxu0 %v1348
      %1459 = vmatpush1.bf16.msra.mxu0 %v1347
      %1460 = vmatprep.subr.bf16.mxu0 %v1350
      %1461 = vmatpush1.bf16.msra.mxu0 %v1349
      %1462 = vmatprep.subr.bf16.mxu0 %v1352
      %1463 = vmatpush1.bf16.msra.mxu0 %v1351
      %1464 = vmatprep.subr.bf16.mxu0 %v1354
      %1465 = vmatpush1.bf16.msra.mxu0 %v1353
      %1466 = vmatprep.subr.bf16.mxu0 %v1356
      %1467 = vmatpush1.bf16.msra.mxu0 %v1355
      %1468 = vmatprep.subr.bf16.mxu0 %v1358
      %1469 = vmatpush1.bf16.msra.mxu0 %v1357
      %1470 = vmatprep.subr.bf16.mxu0 %v1360
      %1471 = vmatpush1.bf16.msra.mxu0 %v1359
      %1472 = vmatprep.subr.bf16.mxu0 %v1362
      %1473 = vmatpush1.bf16.msra.mxu0 %v1361
      %1474 = vmatprep.subr.bf16.mxu0 %v1364
      %1475 = vmatpush1.bf16.msra.mxu0 %v1363
      %1476 = vmatprep.mubr.bf16.mxu0 %v1412
      %1477 = vmatmul.mubr.bf16.gmra.mrb[0].mxu0 %v1411
      %v1478 = vpop.f32.mrb[0].mxu0
      %v1479 = vadd.f32 0.0, %v1478
      %v1480 = vpop.f32.mrb[0].mxu0
      %v1481 = vadd.f32 0.0, %v1480
      %v1482 = vpop.f32.mrb[0].mxu0
      %v1483 = vadd.f32 0.0, %v1482
      %v1484 = vpop.f32.mrb[0].mxu0
      %v1485 = vadd.f32 0.0, %v1484
      %1486 = vmatprep.mubr.bf16.mxu0 %v1415
      %1487 = vmatmul.mubr.bf16.gmra.mrb[0].mxu0 %v1414
      %v1488 = vpop.f32.mrb[0].mxu0
      %v1489 = vadd.f32 0.0, %v1488
      %v1490 = vpop.f32.mrb[0].mxu0
      %v1491 = vadd.f32 0.0, %v1490
      %v1492 = vpop.f32.mrb[0].mxu0
      %v1493 = vadd.f32 0.0, %v1492
      %v1494 = vpop.f32.mrb[0].mxu0
      %v1495 = vadd.f32 0.0, %v1494
      %1496 = vmatprep.mubr.bf16.mxu0 %v1418
      %1497 = vmatmul.mubr.bf16.gmra.mrb[0].mxu0 %v1417
      %v1498 = vpop.f32.mrb[0].mxu0
      %v1499 = vadd.f32 0.0, %v1498
      %v1500 = vpop.f32.mrb[0].mxu0
      %v1501 = vadd.f32 0.0, %v1500
      %v1502 = vpop.f32.mrb[0].mxu0
      %v1503 = vadd.f32 0.0, %v1502
      %v1504 = vpop.f32.mrb[0].mxu0
      %v1505 = vadd.f32 0.0, %v1504
      %1506 = vmatprep.mubr.bf16.mxu0 %v1421
      %1507 = vmatmul.mubr.bf16.gmra.mrb[0].mxu0 %v1420
      %v1508 = vpop.f32.mrb[0].mxu0
      %v1509 = vadd.f32 0.0, %v1508
      %v1510 = vpop.f32.mrb[0].mxu0
      %v1511 = vadd.f32 0.0, %v1510
      %v1512 = vpop.f32.mrb[0].mxu0
      %v1513 = vadd.f32 0.0, %v1512
      %v1514 = vpop.f32.mrb[0].mxu0
      %v1515 = vadd.f32 0.0, %v1514
      %1516 = vdwg.mxu0
      %1517 = vmatprep.subr.bf16.mxu0 %v1366
      %1518 = vmatpush1.bf16.msra.mxu0 %v1365
      %1519 = vmatprep.subr.bf16.mxu0 %v1368
      %1520 = vmatpush1.bf16.msra.mxu0 %v1367
      %1521 = vmatprep.subr.bf16.mxu0 %v1370
      %1522 = vmatpush1.bf16.msra.mxu0 %v1369
      %1523 = vmatprep.subr.bf16.mxu0 0
      %1524 = vmatpush1.bf16.msra.mxu0 0
      %1525 = vmatprep.subr.bf16.mxu0 0
      %1526 = vmatpush1.bf16.msra.mxu0 0
      %1527 = vmatprep.subr.bf16.mxu0 0
      %1528 = vmatpush1.bf16.msra.mxu0 0
      %1529 = vmatprep.subr.bf16.mxu0 0
      %1530 = vmatpush1.bf16.msra.mxu0 0
      %1531 = vmatprep.subr.bf16.mxu0 0
      %1532 = vmatpush1.bf16.msra.mxu0 0
      %1533 = vmatprep.subr.bf16.mxu0 0
      %1534 = vmatpush1.bf16.msra.mxu0 0
      %1535 = vmatprep.subr.bf16.mxu0 0
      %1536 = vmatpush1.bf16.msra.mxu0 0
      %1537 = vmatprep.subr.bf16.mxu0 0
      %1538 = vmatpush1.bf16.msra.mxu0 0
      %1539 = vmatprep.subr.bf16.mxu0 0
      %1540 = vmatpush1.bf16.msra.mxu0 0
      %1541 = vmatprep.subr.bf16.mxu0 0
      %1542 = vmatpush1.bf16.msra.mxu0 0
      %1543 = vmatprep.subr.bf16.mxu0 0
      %1544 = vmatpush1.bf16.msra.mxu0 0
      %1545 = vmatprep.subr.bf16.mxu0 0
      %1546 = vmatpush1.bf16.msra.mxu0 0
      %1547 = vmatprep.subr.bf16.mxu0 0
      %1548 = vmatpush1.bf16.msra.mxu0 0
      %1549 = vmatprep.mubr.bf16.mxu0 0
      %1550 = vmatmul.mubr.bf16.gmra.mrb[0].mxu0 %v1433
      %v1551 = vpop.f32.mrb[0].mxu0
      %v1552 = vadd.f32 %v1479, %v1551
      %v1553 = vpop.f32.mrb[0].mxu0
      %v1554 = vadd.f32 %v1481, %v1553
      %v1555 = vpop.f32.mrb[0].mxu0
      %v1556 = vadd.f32 %v1483, %v1555
      %v1557 = vpop.f32.mrb[0].mxu0
      %v1558 = vadd.f32 %v1485, %v1557
      %1559 = vmatprep.mubr.bf16.mxu0 0
      %1560 = vmatmul.mubr.bf16.gmra.mrb[0].mxu0 %v1436
      %v1561 = vpop.f32.mrb[0].mxu0
      %v1562 = vadd.f32 %v1489, %v1561
      %v1563 = vpop.f32.mrb[0].mxu0
      %v1564 = vadd.f32 %v1491, %v1563
      %v1565 = vpop.f32.mrb[0].mxu0
      %v1566 = vadd.f32 %v1493, %v1565
      %v1567 = vpop.f32.mrb[0].mxu0
      %v1568 = vadd.f32 %v1495, %v1567
      %1569 = vmatprep.mubr.bf16.mxu0 0
      %1570 = vmatmul.mubr.bf16.gmra.mrb[0].mxu0 %v1439
      %v1571 = vpop.f32.mrb[0].mxu0
      %v1572 = vadd.f32 %v1499, %v1571
      %v1573 = vpop.f32.mrb[0].mxu0
      %v1574 = vadd.f32 %v1501, %v1573
      %v1575 = vpop.f32.mrb[0].mxu0
      %v1576 = vadd.f32 %v1503, %v1575
      %v1577 = vpop.f32.mrb[0].mxu0
      %v1578 = vadd.f32 %v1505, %v1577
      %1579 = vmatprep.mubr.bf16.mxu0 0
      %1580 = vmatmul.mubr.bf16.gmra.mrb[0].mxu0 %v1442
      %v1581 = vpop.f32.mrb[0].mxu0
      %v1582 = vadd.f32 %v1509, %v1581
      %v1583 = vpop.f32.mrb[0].mxu0
      %v1584 = vadd.f32 %v1511, %v1583
      %v1585 = vpop.f32.mrb[0].mxu0
      %v1586 = vadd.f32 %v1513, %v1585
      %v1587 = vpop.f32.mrb[0].mxu0
      %v1588 = vadd.f32 %v1515, %v1587
      %1589 = vdwg.mxu0
      %v1590 = vld [vmem:[%s5] sm:$0xff]
      %v1591 = vld [vmem:[%s5 + $0x8] sm:$0xff]
      %v1592 = vld [vmem:[%s5 + $0x10] sm:$0xff]
      %v1593 = vld [vmem:[%s5 + $0x18] sm:$0xff]
      %v1594 = vld [vmem:[%s5 + $0x20] sm:$0xff]
      %v1595 = vld [vmem:[%s5 + $0x28] sm:$0xff]
      %v1596 = vld [vmem:[%s5 + $0x30] sm:$0xff]
      %v1597 = vld [vmem:[%s5 + $0x38] sm:$0xff]
      %1599 = vset.pattern.permute.xlu0 0
      %1600 = vperm.xlu0 %1599, %v1590
      %v1601 = vpop.permute.xlu0 %1600
      %1604 = vset.pattern.permute.xlu0 0
      %1605 = vperm.xlu0 %1604, %v1591
      %v1606 = vpop.permute.xlu0 %1605
      %1609 = vset.pattern.permute.xlu0 0
      %1610 = vperm.xlu0 %1609, %v1592
      %v1611 = vpop.permute.xlu0 %1610
      %1614 = vset.pattern.permute.xlu0 0
      %1615 = vperm.xlu0 %1614, %v1593
      %v1616 = vpop.permute.xlu0 %1615
      %1619 = vset.pattern.permute.xlu0 0
      %1620 = vperm.xlu0 %1619, %v1594
      %v1621 = vpop.permute.xlu0 %1620
      %1624 = vset.pattern.permute.xlu0 0
      %1625 = vperm.xlu0 %1624, %v1595
      %v1626 = vpop.permute.xlu0 %1625
      %1629 = vset.pattern.permute.xlu0 0
      %1630 = vperm.xlu0 %1629, %v1596
      %v1631 = vpop.permute.xlu0 %1630
      %1634 = vset.pattern.permute.xlu0 0
      %1635 = vperm.xlu0 %1634, %v1597
      %v1636 = vpop.permute.xlu0 %1635
      %v1638 = vmul.f32 %v1552, %v1601
      %v1639 = vmul.f32 %v1554, %v1601
      %v1640 = vmul.f32 %v1556, %v1606
      %v1641 = vmul.f32 %v1558, %v1606
      %v1642 = vmul.f32 %v1562, %v1611
      %v1643 = vmul.f32 %v1564, %v1611
      %v1644 = vmul.f32 %v1566, %v1616
      %v1645 = vmul.f32 %v1568, %v1616
      %v1646 = vmul.f32 %v1572, %v1621
      %v1647 = vmul.f32 %v1574, %v1621
      %v1648 = vmul.f32 %v1576, %v1626
      %v1649 = vmul.f32 %v1578, %v1626
      %v1650 = vmul.f32 %v1582, %v1631
      %v1651 = vmul.f32 %v1584, %v1631
      %v1652 = vmul.f32 %v1586, %v1636
      %v1653 = vmul.f32 %v1588, %v1636
      %v1654 = vld [vmem:[%s6] sm:$0xff]
      %v1655 = vld [vmem:[%s6 + $0x8] sm:$0xff]
      %v1656 = vld [vmem:[%s6 + $0x10] sm:$0xff]
      %v1657 = vld [vmem:[%s6 + $0x18] sm:$0xff]
      %v1658 = vld [vmem:[%s6 + $0x20] sm:$0xff]
      %v1659 = vld [vmem:[%s6 + $0x28] sm:$0xff]
      %v1660 = vld [vmem:[%s6 + $0x30] sm:$0xff]
      %v1661 = vld [vmem:[%s6 + $0x38] sm:$0xff]
      %1663 = vset.pattern.permute.xlu0 0
      %1664 = vperm.xlu0 %1663, %v1654
      %v1665 = vpop.permute.xlu0 %1664
      %1668 = vset.pattern.permute.xlu0 0
      %1669 = vperm.xlu0 %1668, %v1655
      %v1670 = vpop.permute.xlu0 %1669
      %1673 = vset.pattern.permute.xlu0 0
      %1674 = vperm.xlu0 %1673, %v1656
      %v1675 = vpop.permute.xlu0 %1674
      %1678 = vset.pattern.permute.xlu0 0
      %1679 = vperm.xlu0 %1678, %v1657
      %v1680 = vpop.permute.xlu0 %1679
      %1683 = vset.pattern.permute.xlu0 0
      %1684 = vperm.xlu0 %1683, %v1658
      %v1685 = vpop.permute.xlu0 %1684
      %1688 = vset.pattern.permute.xlu0 0
      %1689 = vperm.xlu0 %1688, %v1659
      %v1690 = vpop.permute.xlu0 %1689
      %1693 = vset.pattern.permute.xlu0 0
      %1694 = vperm.xlu0 %1693, %v1660
      %v1695 = vpop.permute.xlu0 %1694
      %1698 = vset.pattern.permute.xlu0 0
      %1699 = vperm.xlu0 %1698, %v1661
      %v1700 = vpop.permute.xlu0 %1699
      %v1702 = vadd.f32 %v1638, %v1665
      %v1703 = vadd.f32 %v1639, %v1665
      %v1704 = vadd.f32 %v1640, %v1670
      %v1705 = vadd.f32 %v1641, %v1670
      %v1706 = vadd.f32 %v1642, %v1675
      %v1707 = vadd.f32 %v1643, %v1675
      %v1708 = vadd.f32 %v1644, %v1680
      %v1709 = vadd.f32 %v1645, %v1680
      %v1710 = vadd.f32 %v1646, %v1685
      %v1711 = vadd.f32 %v1647, %v1685
      %v1712 = vadd.f32 %v1648, %v1690
      %v1713 = vadd.f32 %v1649, %v1690
      %v1714 = vadd.f32 %v1650, %v1695
      %v1715 = vadd.f32 %v1651, %v1695
      %v1716 = vadd.f32 %v1652, %v1700
      %v1717 = vadd.f32 %v1653, %v1700
      %v1718 = vadd.f32 %v1702, %v1703
      %1719 = vadd.xlane.f32.xlu0 %v1718
      %v1720 = vpop.xlane.xlu0 %1719
      %v1721 = vadd.f32 %v1704, %v1705
      %1722 = vadd.xlane.f32.xlu0 %v1721
      %v1723 = vpop.xlane.xlu0 %1722
      %v1724 = vadd.f32 %v1706, %v1707
      %1725 = vadd.xlane.f32.xlu0 %v1724
      %v1726 = vpop.xlane.xlu0 %1725
      %v1727 = vadd.f32 %v1708, %v1709
      %1728 = vadd.xlane.f32.xlu0 %v1727
      %v1729 = vpop.xlane.xlu0 %1728
      %v1730 = vmul.f32 %v1720, 0.00390625
      %v1731 = vmul.f32 %v1723, 0.00390625
      %v1732 = vmul.f32 %v1726, 0.00390625
      %v1733 = vmul.f32 %v1729, 0.00390625
      %v1734 = vmax.f32 %v1702, %v1703
      %1735 = vmax.xlane.f32.xlu0 %v1734
      %v1736 = vpop.xlane.xlu0 %1735
      %v1737 = vmax.f32 %v1704, %v1705
      %1738 = vmax.xlane.f32.xlu0 %v1737
      %v1739 = vpop.xlane.xlu0 %1738
      %v1740 = vmax.f32 %v1706, %v1707
      %1741 = vmax.xlane.f32.xlu0 %v1740
      %v1742 = vpop.xlane.xlu0 %1741
      %v1743 = vmax.f32 %v1708, %v1709
      %1744 = vmax.xlane.f32.xlu0 %v1743
      %v1745 = vpop.xlane.xlu0 %1744
      %vm1746 = vcmp.eq.s32.totalorder %v339, 0
      %v1747 = vsel %vm1746, 1.0, 0.0
      %v1748 = vmul.f32 %v1730, %v1747
      %v1749 = vmul.f32 %v1731, %v1747
      %v1750 = vmul.f32 %v1732, %v1747
      %v1751 = vmul.f32 %v1733, %v1747
      %vm1752 = vcmp.eq.s32.totalorder %v339, 1
      %v1753 = vsel %vm1752, 1.0, 0.0
      %v1754 = vmul.f32 %v1736, %v1753
      %v1755 = vmul.f32 %v1739, %v1753
      %v1756 = vmul.f32 %v1742, %v1753
      %v1757 = vmul.f32 %v1745, %v1753
      %v1758 = vadd.f32 %v1748, %v1754
      %v1759 = vadd.f32 %v1749, %v1755
      %v1760 = vadd.f32 %v1750, %v1756
      %v1761 = vadd.f32 %v1751, %v1757
      %v1762 = vld [vmem:[%s7] sm:$0xff]
      %v1763 = vld [vmem:[%s7 + $0x8] sm:$0xff]
      %v1764 = vld [vmem:[%s7 + $0x10] sm:$0xff]
      %v1765 = vld [vmem:[%s7 + $0x18] sm:$0xff]
      %v1766 = vld [vmem:[%s8] sm:$0xff]
      %v1767 = vld [vmem:[%s8 + $0x8] sm:$0xff]
      %v1768 = vld [vmem:[%s8 + $0x10] sm:$0xff]
      %v1769 = vld [vmem:[%s8 + $0x18] sm:$0xff]
      %1771 = vset.pattern.permute.xlu0 0
      %1772 = vperm.xlu0 %1771, %v1762
      %v1773 = vpop.permute.xlu0 %1772
      %1776 = vset.pattern.permute.xlu0 0
      %1777 = vperm.xlu0 %1776, %v1763
      %v1778 = vpop.permute.xlu0 %1777
      %1781 = vset.pattern.permute.xlu0 0
      %1782 = vperm.xlu0 %1781, %v1764
      %v1783 = vpop.permute.xlu0 %1782
      %1786 = vset.pattern.permute.xlu0 0
      %1787 = vperm.xlu0 %1786, %v1765
      %v1788 = vpop.permute.xlu0 %1787
      %v1790 = vmul.f32 %v1773, %v1758
      %v1791 = vmul.f32 %v1778, %v1759
      %v1792 = vmul.f32 %v1783, %v1760
      %v1793 = vmul.f32 %v1788, %v1761
      %v1794 = vsel %vm441, %v1790, 0.0
      %v1795 = vsel %vm441, %v1791, 0.0
      %v1796 = vadd.f32 %v1794, %v1795
      %v1797 = vsel %vm441, %v1792, 0.0
      %v1798 = vadd.f32 %v1796, %v1797
      %v1799 = vsel %vm441, %v1793, 0.0
      %v1800 = vadd.f32 %v1798, %v1799
      %v1801 = vrot.slane %v1800, 4
      %v1802 = vadd.f32 %v1800, %v1801
      %v1803 = vrot.slane %v1802, 2
      %v1804 = vadd.f32 %v1802, %v1803
      %v1805 = vrot.slane %v1804, 1
      %v1806 = vadd.f32 %v1804, %v1805
      %v1807 = vmax.f32 %v1806, 0.0
      %1809 = vset.pattern.permute.xlu0 0
      %1810 = vperm.xlu0 %1809, %v1766
      %v1811 = vpop.permute.xlu0 %1810
      %1814 = vset.pattern.permute.xlu0 0
      %1815 = vperm.xlu0 %1814, %v1767
      %v1816 = vpop.permute.xlu0 %1815
      %1819 = vset.pattern.permute.xlu0 0
      %1820 = vperm.xlu0 %1819, %v1768
      %v1821 = vpop.permute.xlu0 %1820
      %1824 = vset.pattern.permute.xlu0 0
      %1825 = vperm.xlu0 %1824, %v1769
      %v1826 = vpop.permute.xlu0 %1825
      %v1828 = vmul.f32 %v1811, %v1807
      %v1829 = vmul.f32 %v1816, %v1807
      %v1830 = vmul.f32 %v1821, %v1807
      %v1831 = vmul.f32 %v1826, %v1807
      %v1832 = vadd.f32 %v1828, 0.0
      %v1833 = vadd.f32 %v1829, 0.0
      %v1834 = vadd.f32 %v1830, 0.0
      %v1835 = vadd.f32 %v1831, 0.0
      %1836 = vset.pattern.permute.xlu0 1
      %1837 = vperm.xlu0 %1836, %v1762
      %v1838 = vpop.permute.xlu0 %1837
      %1840 = vset.pattern.permute.xlu0 1
      %1841 = vperm.xlu0 %1840, %v1763
      %v1842 = vpop.permute.xlu0 %1841
      %1844 = vset.pattern.permute.xlu0 1
      %1845 = vperm.xlu0 %1844, %v1764
      %v1846 = vpop.permute.xlu0 %1845
      %1848 = vset.pattern.permute.xlu0 1
      %1849 = vperm.xlu0 %1848, %v1765
      %v1850 = vpop.permute.xlu0 %1849
      %v1852 = vmul.f32 %v1838, %v1758
      %v1853 = vmul.f32 %v1842, %v1759
      %v1854 = vmul.f32 %v1846, %v1760
      %v1855 = vmul.f32 %v1850, %v1761
      %v1856 = vsel %vm441, %v1852, 0.0
      %v1857 = vsel %vm441, %v1853, 0.0
      %v1858 = vadd.f32 %v1856, %v1857
      %v1859 = vsel %vm441, %v1854, 0.0
      %v1860 = vadd.f32 %v1858, %v1859
      %v1861 = vsel %vm441, %v1855, 0.0
      %v1862 = vadd.f32 %v1860, %v1861
      %v1863 = vrot.slane %v1862, 4
      %v1864 = vadd.f32 %v1862, %v1863
      %v1865 = vrot.slane %v1864, 2
      %v1866 = vadd.f32 %v1864, %v1865
      %v1867 = vrot.slane %v1866, 1
      %v1868 = vadd.f32 %v1866, %v1867
      %v1869 = vmax.f32 %v1868, 0.0
      %1870 = vset.pattern.permute.xlu0 1
      %1871 = vperm.xlu0 %1870, %v1766
      %v1872 = vpop.permute.xlu0 %1871
      %1874 = vset.pattern.permute.xlu0 1
      %1875 = vperm.xlu0 %1874, %v1767
      %v1876 = vpop.permute.xlu0 %1875
      %1878 = vset.pattern.permute.xlu0 1
      %1879 = vperm.xlu0 %1878, %v1768
      %v1880 = vpop.permute.xlu0 %1879
      %1882 = vset.pattern.permute.xlu0 1
      %1883 = vperm.xlu0 %1882, %v1769
      %v1884 = vpop.permute.xlu0 %1883
      %v1886 = vmul.f32 %v1872, %v1869
      %v1887 = vmul.f32 %v1876, %v1869
      %v1888 = vmul.f32 %v1880, %v1869
      %v1889 = vmul.f32 %v1884, %v1869
      %v1890 = vadd.f32 %v1832, %v1886
      %v1891 = vadd.f32 %v1833, %v1887
      %v1892 = vadd.f32 %v1834, %v1888
      %v1893 = vadd.f32 %v1835, %v1889
      %1898 = vrot.lane.b32.xlu0 %v1890, 127
      %v1899 = vpop.permute.xlu0 %1898
      %1900 = vrot.lane.b32.xlu0 %v1891, 127
      %v1901 = vpop.permute.xlu0 %1900
      %1902 = vrot.lane.b32.xlu0 %v1892, 127
      %v1903 = vpop.permute.xlu0 %1902
      %1904 = vrot.lane.b32.xlu0 %v1893, 127
      %v1905 = vpop.permute.xlu0 %1904
      %v1910 = vadd.f32 %v1890, %v1899
      %v1911 = vadd.f32 %v1891, %v1901
      %v1912 = vadd.f32 %v1892, %v1903
      %v1913 = vadd.f32 %v1893, %v1905
      %v1914 = vxor.u32 %v1910, 2147483648
      %v1915 = vxor.u32 %v1911, 2147483648
      %v1916 = vxor.u32 %v1912, 2147483648
      %v1917 = vxor.u32 %v1913, 2147483648
      %v1918 = vmul.f32 %v1914, 1.442695
      %v1919 = vpow.pop %v1918
      %v1920 = vmul.f32 %v1915, 1.442695
      %v1921 = vpow.pop %v1920
      %v1922 = vmul.f32 %v1916, 1.442695
      %v1923 = vpow.pop %v1922
      %v1924 = vmul.f32 %v1917, 1.442695
      %v1925 = vpow.pop %v1924
      %v1926 = vadd.f32 %v1919, 1.0
      %v1927 = vadd.f32 %v1921, 1.0
      %v1928 = vadd.f32 %v1923, 1.0
      %v1929 = vadd.f32 %v1925, 1.0
      %v1930 = vrcp.pop %v1926
      %v1931 = vmul.f32 1.0, %v1930
      %v1932 = vrcp.pop %v1927
      %v1933 = vmul.f32 1.0, %v1932
      %v1934 = vrcp.pop %v1928
      %v1935 = vmul.f32 1.0, %v1934
      %v1936 = vrcp.pop %v1929
      %v1937 = vmul.f32 1.0, %v1936
      %1939 = vset.pattern.permute.xlu0 0
      %1940 = vperm.xlu0 %1939, %v1931
      %v1941 = vpop.permute.xlu0 %1940
      %1944 = vset.pattern.permute.xlu0 0
      %1945 = vperm.xlu0 %1944, %v1933
      %v1946 = vpop.permute.xlu0 %1945
      %1949 = vset.pattern.permute.xlu0 0
      %1950 = vperm.xlu0 %1949, %v1935
      %v1951 = vpop.permute.xlu0 %1950
      %1954 = vset.pattern.permute.xlu0 0
      %1955 = vperm.xlu0 %1954, %v1937
      %v1956 = vpop.permute.xlu0 %1955
      %v1958 = vmul.f32 %v1702, %v1941
      %v1959 = vmul.f32 %v1703, %v1941
      %v1960 = vmul.f32 %v1704, %v1946
      %v1961 = vmul.f32 %v1705, %v1946
      %v1962 = vmul.f32 %v1706, %v1951
      %v1963 = vmul.f32 %v1707, %v1951
      %v1964 = vmul.f32 %v1708, %v1956
      %v1965 = vmul.f32 %v1709, %v1956
      %v1966 = vadd.f32 %v1958, %v1710
      %v1967 = vadd.f32 %v1959, %v1711
      %v1968 = vadd.f32 %v1960, %v1712
      %v1969 = vadd.f32 %v1961, %v1713
      %v1970 = vadd.f32 %v1962, %v1714
      %v1971 = vadd.f32 %v1963, %v1715
      %v1972 = vadd.f32 %v1964, %v1716
      %v1973 = vadd.f32 %v1965, %v1717
      %1974 = vst [vmem:[%s332] sm:$0xff] %v1966
      %1975 = vst [vmem:[%s332 + $0x8] sm:$0xff] %v1967
      %1976 = vst [vmem:[%s332 + $0x10] sm:$0xff] %v1968
      %1977 = vst [vmem:[%s332 + $0x18] sm:$0xff] %v1969
      %1978 = vst [vmem:[%s332 + $0x20] sm:$0xff] %v1970
      %1979 = vst [vmem:[%s332 + $0x28] sm:$0xff] %v1971
      %1980 = vst [vmem:[%s332 + $0x30] sm:$0xff] %v1972
      %1981 = vst [vmem:[%s332 + $0x38] sm:$0xff] %v1973
      %p1982 = scmp.lt.s32.totalorder %s20, 1
      %s1983 = scalar_select %p1982, %s20, 1
      %s1984 = smul.addr %s1983, 8
      %s1985 = smul.addr %s1984, 8
      %s1986 = scalar_lea.vmem %s9, %s1985
      // Predicated region
      $region57: #{block_dct_forward.1} parent=55 // pred_check
        %p1987 = pneg %p232
      $region58: #{block_dct_forward.1} parent=55 // pred_check_branch
        %1989 = sbr.rel (%p1987) target = $region60
      $region59: #{block_dct_forward.1} parent=55 // pred_region
        _
      $region60: #{block_dct_forward.1} parent=55 // pred_fallthru
        _
    $region56: #{block_dct_forward.1} parent=5 // pred_fallthru
      _
    %p1990 = scmp.le.s32.totalorder 2, %s15
    // Predicated region
    $region61: #{block_dct_forward.1} parent=5 // pred_check
      %p1991 = pneg %p1990
    $region62: #{block_dct_forward.1} parent=5 // pred_check_branch
      %1993 = sbr.rel (%p1991) target = $region64
    $region63: #{block_dct_forward.1} parent=5 // pred_region
      %s1994 = ssub.s32 %s15, 2
      // Predicated region
      $region65: #{block_dct_forward.1} parent=63 // pred_check
        %p1995 = pneg %p238
      $region66: #{block_dct_forward.1} parent=63 // pred_check_branch
        %1997 = sbr.rel (%p1995) target = $region68
      $region67: #{block_dct_forward.1} parent=63 // pred_region
        %p1998 = scmp.lt.s32.totalorder %s21, 1
        %s1999 = scalar_select %p1998, %s21, 1
        %s2000 = smul.addr %s1999, 8
        %s2001 = smul.addr %s2000, 8
        %s2002 = scalar_lea.vmem %s9, %s2001
      $region68: #{block_dct_forward.1} parent=63 // pred_fallthru
        _
    $region64: #{block_dct_forward.1} parent=5 // pred_fallthru
      _
  $region6: #{block_dct_forward.1} parent=0 // loop_footer
    %s19 = sadd.s32 1, %s15
  $region7: #{block_dct_forward.1} parent=0 // loop_footer_branch
    %14 = sbr.rel target = $region3
  $region8: #{block_dct_forward.1} parent=0 // loop_exit
    _

</llo_original>
